<compile_context>
chip_gen: v6e
topology: v6e:2x2x1
jax: 0.10.0
libtpu: 0.0.40
codegen_flags: <defaults>
</compile_context>

<pallas_src>
import jax
import jax.numpy as jnp
import numpy as np
from jax.experimental import pallas as pl
from jax.experimental.pallas import tpu as pltpu


def _round_up(n, m):
    return ((n + m - 1) // m) * m


def mlp_kernel(x_ref, wc_ref, bc_ref,
               w1_ref, b1_ref, w2_ref, b2_ref, w3_ref, b3_ref,
               w4_ref, b4_ref, w5_ref, b5_ref, w6_ref, b6_ref,
               out_ref):
    # x arrives as f32; cast to bf16 on the VPU (which has slack) so the HBM
    # read of x is 4 B/elem and there is no separate XLA cast pass.
    x = x_ref[...].astype(jnp.bfloat16)              # (TB, L)

    # Conv1d(1, 64, k=3) as ONE MXU matmul against the banded (Toeplitz)
    # weight.  Columns are ordered [even timesteps | odd timesteps], each half
    # in p*64 + c order, so the pool below is a pure lane-aligned VPU max.
    conv = jnp.dot(x, wc_ref[...], preferred_element_type=jnp.float32)
    half = conv.shape[1] // 2                        # = Tp * 64 (128-aligned here)

    # MaxPool1d(2) first, then bias + ReLU (per-channel bias and ReLU commute
    # with max) -> half-width VPU work, identical math.
    h = jnp.maximum(conv[:, :half], conv[:, half:])  # (TB, Tp*64)
    h = jnp.maximum(h + bc_ref[...], 0.0)

    def dense_relu(h, w_ref, b_ref):
        y = jnp.dot(h.astype(w_ref.dtype), w_ref[...],
                    preferred_element_type=jnp.float32) + b_ref[...]
        return jnp.maximum(y, 0.0)

    h = dense_relu(h, w1_ref, b1_ref)                # (TB, 256)
    h = dense_relu(h, w2_ref, b2_ref)                # (TB, 128)
    h = dense_relu(h, w3_ref, b3_ref)                # (TB, 64)
    h = dense_relu(h, w4_ref, b4_ref)                # (TB, 32)
    h = dense_relu(h, w5_ref, b5_ref)                # (TB, 16)

    # fc6 (16 -> 1): VPU multiply + lane reduce (no N=1 MXU matmul).
    # Store lane-dense as a (1, TB) row -> unmasked full-lane stores.
    out = jnp.sum(h * w6_ref[...], axis=-1, keepdims=True) + b6_ref[...]
    out_ref[...] = out.reshape(out_ref.shape).astype(out_ref.dtype)


def prepare_params(params, input_size):
    """One-time host-side weight prep (Toeplitz conv, column reorder, fc1 perm)."""
    L = input_size
    Tout = L - 2
    Tp = Tout // 2                   # timesteps that survive MaxPool1d(2)

    # Banded conv weight with columns ordered [even timesteps | odd timesteps],
    # each half in p*64 + c order:
    #   Wc[l, p*64 + c]            = conv_w[c, 0, l - 2p]
    #   Wc[l, Tp*64 + p*64 + c]    = conv_w[c, 0, l - (2p+1)]     (0 <= tap < 3)
    # TODO(synk): Wc is L x (L-2)*64 (quadratic in input_size); for large L
    # (~512+) switch to 3 shifted matmuls against the raw (3, 64) kernel to
    # stay inside v7x's 64 MiB VMEM and avoid wasted MXU FLOPs.
    cw_t = jnp.transpose(params['conv_w'][:, 0, :])              # (3, 64)
    t_order = jnp.concatenate([2 * jnp.arange(Tp), 2 * jnp.arange(Tp) + 1])
    l_idx = jnp.arange(L)[:, None]                               # (L, 1)
    k = l_idx - t_order[None, :]                                 # (L, 2*Tp)
    valid = (k >= 0) & (k < 3)
    kc = jnp.clip(k, 0, 2)
    Wc = jnp.where(valid[:, :, None], cw_t[kc], 0.0)             # (L, 2*Tp, 64)
    Wc = Wc.reshape(L, 2 * Tp * 64).astype(jnp.bfloat16)
    # Bias is added AFTER the pool: per-channel, width Tp*64, in p*64+c order.
    bc = jnp.tile(params['conv_b'], (Tp,)).reshape(1, Tp * 64).astype(jnp.float32)

    # Permute fc1 rows: PyTorch flatten index c*Tp + p  ->  kernel index p*64 + c.
    w1 = jnp.transpose(params['fc1_w'])                          # (64*Tp, 256)
    w1 = w1.reshape(64, Tp, 256).transpose(1, 0, 2).reshape(Tp * 64, 256)

    ws = [w1] + [jnp.transpose(params[f'fc{i}_w']) for i in range(2, 6)]
    ws = [w.astype(jnp.bfloat16) for w in ws]
    bs = [params[f'fc{i}_b'].reshape(1, -1).astype(jnp.float32) for i in range(1, 6)]

    w6 = params['fc6_w'].reshape(1, 16).astype(jnp.float32)
    b6 = params['fc6_b'].reshape(1, 1).astype(jnp.float32)

    prepared = [Wc, bc]
    for w, b in zip(ws, bs):
        prepared += [w, b]
    prepared += [w6, b6]
    return tuple(jax.device_put(p) for p in prepared)


def mlp_forward_pallas(x_ncl, prepared, *, tb=None):
    B, C, L = x_ncl.shape
    assert C == 1, "Conv1d expects a single input channel"

    x = x_ncl.reshape(B, L)          # keep f32; the kernel casts to bf16

    if tb is None:
        b8 = _round_up(B, 8)
        if b8 <= 512:
            # Single grid step: splitting a small batch across grid steps /
            # TensorCores only doubles fixed per-step overhead.
            tb = b8
        else:
            # Large MXU-friendly tiles (>=256 rows each), capped at 512 so the
            # f32 conv intermediate + activations stay well inside v5e's
            # 16 MiB default scoped-VMEM limit; >=2 steps lets v7x's two
            # TensorCores both get work via the "parallel" grid axis.
            tb = min(512, _round_up(pl.cdiv(b8, 2), 8))
    tb = max(8, (tb // 8) * 8)

    B_pad = _round_up(B, tb)
    if B_pad != B:
        x = jnp.pad(x, ((0, B_pad - B), (0, 0)))
    n_steps = B_pad // tb

    inputs = (x,) + tuple(prepared)

    # Weights/biases: whole-array, VMEM-resident, no per-step double-buffering.
    vmem_spec = pl.BlockSpec(memory_space=pltpu.MemorySpace.VMEM)
    in_specs = ([pl.BlockSpec((tb, L), lambda i: (i, 0))]
                + [vmem_spec] * len(prepared))
    # Lane-dense output: one (1, tb) row per grid step.
    out_spec = pl.BlockSpec((1, tb), lambda i: (i, 0))

    out = pl.pallas_call(
        mlp_kernel,
        out_shape=jax.ShapeDtypeStruct((n_steps, tb), jnp.float32),
        grid=(n_steps,),
        in_specs=in_specs,
        out_specs=out_spec,
        compiler_params=pltpu.CompilerParams(dimension_semantics=("parallel",)),
    )(*inputs)
    return out.reshape(B_pad, 1)[:B]


def mlp_forward_reference(x_ncl, params):
    """Pure-JAX f32 reference with PyTorch semantics (NCL, channel-major flatten)."""
    x = x_ncl[:, 0, :]
    B, L = x.shape
    Tout = L - 2
    Tp = Tout // 2
    patches = jnp.stack([x[:, k:k + Tout] for k in range(3)], axis=1)   # (B, 3, Tout)
    conv = jnp.einsum('ck,bkt->bct', params['conv_w'][:, 0, :], patches)
    conv = conv + params['conv_b'][None, :, None]                       # (B, 64, Tout)
    conv = jnp.maximum(conv, 0.0)
    pooled = conv[:, :, :2 * Tp].reshape(B, 64, Tp, 2).max(axis=-1)     # (B, 64, Tp)
    h = pooled.reshape(B, 64 * Tp)
    h = jnp.maximum(h @ params['fc1_w'].T + params['fc1_b'], 0.0)
    h = jnp.maximum(h @ params['fc2_w'].T + params['fc2_b'], 0.0)
    h = jnp.maximum(h @ params['fc3_w'].T + params['fc3_b'], 0.0)
    h = jnp.maximum(h @ params['fc4_w'].T + params['fc4_b'], 0.0)
    h = jnp.maximum(h @ params['fc5_w'].T + params['fc5_b'], 0.0)
    return h @ params['fc6_w'].T + params['fc6_b']


def init_params(key, input_size):
    """Deterministic PyTorch-style (uniform +-1/sqrt(fan_in)) init."""
    Tout = input_size - 2
    Tp = Tout // 2
    params = {}
    key, k1, k2 = jax.random.split(key, 3)
    bound = 1.0 / np.sqrt(1 * 3)
    params['conv_w'] = jax.random.uniform(k1, (64, 1, 3), jnp.float32, -bound, bound)
    params['conv_b'] = jax.random.uniform(k2, (64,), jnp.float32, -bound, bound)
    sizes = [(64 * Tp, 256), (256, 128), (128, 64), (64, 32), (32, 16), (16, 1)]
    for i, (fin, fout) in enumerate(sizes, start=1):
        key, kw, kb = jax.random.split(key, 3)
        bound = 1.0 / np.sqrt(fin)
        params[f'fc{i}_w'] = jax.random.uniform(kw, (fout, fin), jnp.float32, -bound, bound)
        params[f'fc{i}_b'] = jax.random.uniform(kb, (fout,), jnp.float32, -bound, bound)
    return params


if __name__ == "__main__":
    input_size = 34          # conv -> 32, pool -> 16, flatten -> 64*16 = 1024
    batch = 16
    key = jax.random.PRNGKey(0)
    kx, kp = jax.random.split(key)
    x = jax.random.normal(kx, (batch, 1, input_size), jnp.float32)
    params = init_params(kp, input_size)

    prepared = prepare_params(params, input_size)   # one-time host-side prep

    out = mlp_forward_pallas(x, prepared)
    out = jax.block_until_ready(out)

    ref = mlp_forward_reference(x, params)
    np.testing.assert_allclose(np.asarray(out), np.asarray(ref), rtol=2e-2, atol=2e-2)
    print("KERNEL_OK")
</pallas_src>

<mosaic_0001>
module attributes {stable_mosaic.version = 11 : i64} {
  func.func @mlp_kernel(%arg0: i32, %arg1: memref<16x34xf32, #tpu.memory_space<vmem>>, %arg2: memref<34x2048xbf16, #tpu.memory_space<vmem>>, %arg3: memref<1x1024xf32, #tpu.memory_space<vmem>>, %arg4: memref<1024x256xbf16, #tpu.memory_space<vmem>>, %arg5: memref<1x256xf32, #tpu.memory_space<vmem>>, %arg6: memref<256x128xbf16, #tpu.memory_space<vmem>>, %arg7: memref<1x128xf32, #tpu.memory_space<vmem>>, %arg8: memref<128x64xbf16, #tpu.memory_space<vmem>>, %arg9: memref<1x64xf32, #tpu.memory_space<vmem>>, %arg10: memref<64x32xbf16, #tpu.memory_space<vmem>>, %arg11: memref<1x32xf32, #tpu.memory_space<vmem>>, %arg12: memref<32x16xbf16, #tpu.memory_space<vmem>>, %arg13: memref<1x16xf32, #tpu.memory_space<vmem>>, %arg14: memref<1x16xf32, #tpu.memory_space<vmem>>, %arg15: memref<1x1xf32, #tpu.memory_space<vmem>>, %arg16: memref<1x16xf32, #tpu.memory_space<vmem>>) attributes {dimension_semantics = [#tpu.dimension_semantics<parallel>], iteration_bounds = array<i64: 1>, scalar_prefetch = 0 : i64, scratch_operands = 0 : i64, tpu.core_type = #tpu.core_type<tc>, window_params = [{transform_indices = @transform_0, window_bounds = array<i64: 16, 34>}, {pipeline_mode = #tpu.pipeline_mode<synchronous>, transform_indices = @transform_1, window_bounds = array<i64: 34, 2048>}, {pipeline_mode = #tpu.pipeline_mode<synchronous>, transform_indices = @transform_2, window_bounds = array<i64: 1, 1024>}, {pipeline_mode = #tpu.pipeline_mode<synchronous>, transform_indices = @transform_3, window_bounds = array<i64: 1024, 256>}, {pipeline_mode = #tpu.pipeline_mode<synchronous>, transform_indices = @transform_4, window_bounds = array<i64: 1, 256>}, {pipeline_mode = #tpu.pipeline_mode<synchronous>, transform_indices = @transform_5, window_bounds = array<i64: 256, 128>}, {pipeline_mode = #tpu.pipeline_mode<synchronous>, transform_indices = @transform_6, window_bounds = array<i64: 1, 128>}, {pipeline_mode = #tpu.pipeline_mode<synchronous>, transform_indices = @transform_7, window_bounds = array<i64: 128, 64>}, {pipeline_mode = #tpu.pipeline_mode<synchronous>, transform_indices = @transform_8, window_bounds = array<i64: 1, 64>}, {pipeline_mode = #tpu.pipeline_mode<synchronous>, transform_indices = @transform_9, window_bounds = array<i64: 64, 32>}, {pipeline_mode = #tpu.pipeline_mode<synchronous>, transform_indices = @transform_10, window_bounds = array<i64: 1, 32>}, {pipeline_mode = #tpu.pipeline_mode<synchronous>, transform_indices = @transform_11, window_bounds = array<i64: 32, 16>}, {pipeline_mode = #tpu.pipeline_mode<synchronous>, transform_indices = @transform_12, window_bounds = array<i64: 1, 16>}, {pipeline_mode = #tpu.pipeline_mode<synchronous>, transform_indices = @transform_13, window_bounds = array<i64: 1, 16>}, {pipeline_mode = #tpu.pipeline_mode<synchronous>, transform_indices = @transform_14, window_bounds = array<i64: 1, 1>}, {transform_indices = @transform_15, window_bounds = array<i64: 1, 16>}]} {
    %c0 = arith.constant 0 : index
    %c0_0 = arith.constant 0 : index
    %0 = vector.load %arg1[%c0, %c0_0] : memref<16x34xf32, #tpu.memory_space<vmem>>, vector<16x34xf32>
    %1 = arith.truncf %0 : vector<16x34xf32> to vector<16x34xbf16>
    %c0_1 = arith.constant 0 : index
    %c0_2 = arith.constant 0 : index
    %2 = vector.load %arg2[%c0_1, %c0_2] : memref<34x2048xbf16, #tpu.memory_space<vmem>>, vector<34x2048xbf16>
    %cst = arith.constant dense<0.000000e+00> : vector<16x2048xf32>
    %3 = tpu.matmul %1, %2, %cst {dimension_numbers = #tpu.dot_dimension_numbers<[1], [0], [0], [1], [0, 0, 1, 1], [], []>} : vector<16x34xbf16>, vector<34x2048xbf16>, vector<16x2048xf32> -> vector<16x2048xf32>
    %4 = vector.extract_strided_slice %3 {offsets = [0, 0], sizes = [16, 1024], strides = [1, 1]} : vector<16x2048xf32> to vector<16x1024xf32>
    %5 = vector.extract_strided_slice %3 {offsets = [0, 1024], sizes = [16, 1024], strides = [1, 1]} : vector<16x2048xf32> to vector<16x1024xf32>
    %6 = arith.maximumf %4, %5 : vector<16x1024xf32>
    %c0_3 = arith.constant 0 : index
    %c0_4 = arith.constant 0 : index
    %7 = vector.load %arg3[%c0_3, %c0_4] : memref<1x1024xf32, #tpu.memory_space<vmem>>, vector<1x1024xf32>
    %8 = vector.broadcast %7 : vector<1x1024xf32> to vector<16x1024xf32>
    %9 = arith.addf %6, %8 : vector<16x1024xf32>
    %cst_5 = arith.constant 0.000000e+00 : f32
    %10 = vector.broadcast %cst_5 : f32 to vector<16x1024xf32>
    %11 = arith.maximumf %9, %10 : vector<16x1024xf32>
    %12 = arith.truncf %11 : vector<16x1024xf32> to vector<16x1024xbf16>
    %c0_6 = arith.constant 0 : index
    %c0_7 = arith.constant 0 : index
    %13 = vector.load %arg4[%c0_6, %c0_7] : memref<1024x256xbf16, #tpu.memory_space<vmem>>, vector<1024x256xbf16>
    %cst_8 = arith.constant dense<0.000000e+00> : vector<16x256xf32>
    %14 = tpu.matmul %12, %13, %cst_8 {dimension_numbers = #tpu.dot_dimension_numbers<[1], [0], [0], [1], [0, 0, 1, 1], [], []>} : vector<16x1024xbf16>, vector<1024x256xbf16>, vector<16x256xf32> -> vector<16x256xf32>
    %c0_9 = arith.constant 0 : index
    %c0_10 = arith.constant 0 : index
    %15 = vector.load %arg5[%c0_9, %c0_10] : memref<1x256xf32, #tpu.memory_space<vmem>>, vector<1x256xf32>
    %16 = vector.broadcast %15 : vector<1x256xf32> to vector<16x256xf32>
    %17 = arith.addf %14, %16 : vector<16x256xf32>
    %cst_11 = arith.constant 0.000000e+00 : f32
    %18 = vector.broadcast %cst_11 : f32 to vector<16x256xf32>
    %19 = arith.maximumf %17, %18 : vector<16x256xf32>
    %20 = arith.truncf %19 : vector<16x256xf32> to vector<16x256xbf16>
    %c0_12 = arith.constant 0 : index
    %c0_13 = arith.constant 0 : index
    %21 = vector.load %arg6[%c0_12, %c0_13] : memref<256x128xbf16, #tpu.memory_space<vmem>>, vector<256x128xbf16>
    %cst_14 = arith.constant dense<0.000000e+00> : vector<16x128xf32>
    %22 = tpu.matmul %20, %21, %cst_14 {dimension_numbers = #tpu.dot_dimension_numbers<[1], [0], [0], [1], [0, 0, 1, 1], [], []>} : vector<16x256xbf16>, vector<256x128xbf16>, vector<16x128xf32> -> vector<16x128xf32>
    %c0_15 = arith.constant 0 : index
    %c0_16 = arith.constant 0 : index
    %23 = vector.load %arg7[%c0_15, %c0_16] : memref<1x128xf32, #tpu.memory_space<vmem>>, vector<1x128xf32>
    %24 = vector.broadcast %23 : vector<1x128xf32> to vector<16x128xf32>
    %25 = arith.addf %22, %24 : vector<16x128xf32>
    %cst_17 = arith.constant 0.000000e+00 : f32
    %26 = vector.broadcast %cst_17 : f32 to vector<16x128xf32>
    %27 = arith.maximumf %25, %26 : vector<16x128xf32>
    %28 = arith.truncf %27 : vector<16x128xf32> to vector<16x128xbf16>
    %c0_18 = arith.constant 0 : index
    %c0_19 = arith.constant 0 : index
    %29 = vector.load %arg8[%c0_18, %c0_19] : memref<128x64xbf16, #tpu.memory_space<vmem>>, vector<128x64xbf16>
    %cst_20 = arith.constant dense<0.000000e+00> : vector<16x64xf32>
    %30 = tpu.matmul %28, %29, %cst_20 {dimension_numbers = #tpu.dot_dimension_numbers<[1], [0], [0], [1], [0, 0, 1, 1], [], []>} : vector<16x128xbf16>, vector<128x64xbf16>, vector<16x64xf32> -> vector<16x64xf32>
    %c0_21 = arith.constant 0 : index
    %c0_22 = arith.constant 0 : index
    %31 = vector.load %arg9[%c0_21, %c0_22] : memref<1x64xf32, #tpu.memory_space<vmem>>, vector<1x64xf32>
    %32 = vector.broadcast %31 : vector<1x64xf32> to vector<16x64xf32>
    %33 = arith.addf %30, %32 : vector<16x64xf32>
    %cst_23 = arith.constant 0.000000e+00 : f32
    %34 = vector.broadcast %cst_23 : f32 to vector<16x64xf32>
    %35 = arith.maximumf %33, %34 : vector<16x64xf32>
    %36 = arith.truncf %35 : vector<16x64xf32> to vector<16x64xbf16>
    %c0_24 = arith.constant 0 : index
    %c0_25 = arith.constant 0 : index
    %37 = vector.load %arg10[%c0_24, %c0_25] : memref<64x32xbf16, #tpu.memory_space<vmem>>, vector<64x32xbf16>
    %cst_26 = arith.constant dense<0.000000e+00> : vector<16x32xf32>
    %38 = tpu.matmul %36, %37, %cst_26 {dimension_numbers = #tpu.dot_dimension_numbers<[1], [0], [0], [1], [0, 0, 1, 1], [], []>} : vector<16x64xbf16>, vector<64x32xbf16>, vector<16x32xf32> -> vector<16x32xf32>
    %c0_27 = arith.constant 0 : index
    %c0_28 = arith.constant 0 : index
    %39 = vector.load %arg11[%c0_27, %c0_28] : memref<1x32xf32, #tpu.memory_space<vmem>>, vector<1x32xf32>
    %40 = vector.broadcast %39 : vector<1x32xf32> to vector<16x32xf32>
    %41 = arith.addf %38, %40 : vector<16x32xf32>
    %cst_29 = arith.constant 0.000000e+00 : f32
    %42 = vector.broadcast %cst_29 : f32 to vector<16x32xf32>
    %43 = arith.maximumf %41, %42 : vector<16x32xf32>
    %44 = arith.truncf %43 : vector<16x32xf32> to vector<16x32xbf16>
    %c0_30 = arith.constant 0 : index
    %c0_31 = arith.constant 0 : index
    %45 = vector.load %arg12[%c0_30, %c0_31] : memref<32x16xbf16, #tpu.memory_space<vmem>>, vector<32x16xbf16>
    %cst_32 = arith.constant dense<0.000000e+00> : vector<16x16xf32>
    %46 = tpu.matmul %44, %45, %cst_32 {dimension_numbers = #tpu.dot_dimension_numbers<[1], [0], [0], [1], [0, 0, 1, 1], [], []>} : vector<16x32xbf16>, vector<32x16xbf16>, vector<16x16xf32> -> vector<16x16xf32>
    %c0_33 = arith.constant 0 : index
    %c0_34 = arith.constant 0 : index
    %47 = vector.load %arg13[%c0_33, %c0_34] : memref<1x16xf32, #tpu.memory_space<vmem>>, vector<1x16xf32>
    %48 = vector.broadcast %47 : vector<1x16xf32> to vector<16x16xf32>
    %49 = arith.addf %46, %48 : vector<16x16xf32>
    %cst_35 = arith.constant 0.000000e+00 : f32
    %50 = vector.broadcast %cst_35 : f32 to vector<16x16xf32>
    %51 = arith.maximumf %49, %50 : vector<16x16xf32>
    %c0_36 = arith.constant 0 : index
    %c0_37 = arith.constant 0 : index
    %52 = vector.load %arg14[%c0_36, %c0_37] : memref<1x16xf32, #tpu.memory_space<vmem>>, vector<1x16xf32>
    %53 = vector.broadcast %52 : vector<1x16xf32> to vector<16x16xf32>
    %54 = arith.mulf %51, %53 : vector<16x16xf32>
    %cst_38 = arith.constant dense<0.000000e+00> : vector<16xf32>
    %55 = vector.multi_reduction <add>, %54, %cst_38 [1] : vector<16x16xf32> to vector<16xf32>
    %56 = vector.shape_cast %55 : vector<16xf32> to vector<16x1xf32>
    %c0_39 = arith.constant 0 : index
    %c0_40 = arith.constant 0 : index
    %57 = vector.load %arg15[%c0_39, %c0_40] : memref<1x1xf32, #tpu.memory_space<vmem>>, vector<1x1xf32>
    %58 = vector.broadcast %57 : vector<1x1xf32> to vector<16x1xf32>
    %59 = arith.addf %56, %58 : vector<16x1xf32>
    %60 = vector.shape_cast %59 : vector<16x1xf32> to vector<1x16xf32>
    %c0_41 = arith.constant 0 : index
    %c0_42 = arith.constant 0 : index
    %61 = vector.load %arg16[%c0_41, %c0_42] : memref<1x16xf32, #tpu.memory_space<vmem>>, vector<1x16xf32>
    tpu.vector_store %arg16[%c0_41, %c0_42], %60 {strides = array<i32>} : memref<1x16xf32, #tpu.memory_space<vmem>>, vector<1x16xf32>,
    return
  }
  func.func @transform_0(%arg0: i32) -> (i32, i32) {
    %c0_i32 = arith.constant 0 : i32
    %c0_i32_0 = arith.constant 0 : i32
    return %arg0, %c0_i32 : i32, i32
  }
  func.func @transform_1(%arg0: i32) -> (i32, i32) {
    %c0_i32 = arith.constant 0 : i32
    %c0_i32_0 = arith.constant 0 : i32
    %c0_i32_1 = arith.constant 0 : i32
    return %c0_i32, %c0_i32_0 : i32, i32
  }
  func.func @transform_2(%arg0: i32) -> (i32, i32) {
    %c0_i32 = arith.constant 0 : i32
    %c0_i32_0 = arith.constant 0 : i32
    %c0_i32_1 = arith.constant 0 : i32
    return %c0_i32, %c0_i32_0 : i32, i32
  }
  func.func @transform_3(%arg0: i32) -> (i32, i32) {
    %c0_i32 = arith.constant 0 : i32
    %c0_i32_0 = arith.constant 0 : i32
    %c0_i32_1 = arith.constant 0 : i32
    return %c0_i32, %c0_i32_0 : i32, i32
  }
  func.func @transform_4(%arg0: i32) -> (i32, i32) {
    %c0_i32 = arith.constant 0 : i32
    %c0_i32_0 = arith.constant 0 : i32
    %c0_i32_1 = arith.constant 0 : i32
    return %c0_i32, %c0_i32_0 : i32, i32
  }
  func.func @transform_5(%arg0: i32) -> (i32, i32) {
    %c0_i32 = arith.constant 0 : i32
    %c0_i32_0 = arith.constant 0 : i32
    %c0_i32_1 = arith.constant 0 : i32
    return %c0_i32, %c0_i32_0 : i32, i32
  }
  func.func @transform_6(%arg0: i32) -> (i32, i32) {
    %c0_i32 = arith.constant 0 : i32
    %c0_i32_0 = arith.constant 0 : i32
    %c0_i32_1 = arith.constant 0 : i32
    return %c0_i32, %c0_i32_0 : i32, i32
  }
  func.func @transform_7(%arg0: i32) -> (i32, i32) {
    %c0_i32 = arith.constant 0 : i32
    %c0_i32_0 = arith.constant 0 : i32
    %c0_i32_1 = arith.constant 0 : i32
    return %c0_i32, %c0_i32_0 : i32, i32
  }
  func.func @transform_8(%arg0: i32) -> (i32, i32) {
    %c0_i32 = arith.constant 0 : i32
    %c0_i32_0 = arith.constant 0 : i32
    %c0_i32_1 = arith.constant 0 : i32
    return %c0_i32, %c0_i32_0 : i32, i32
  }
  func.func @transform_9(%arg0: i32) -> (i32, i32) {
    %c0_i32 = arith.constant 0 : i32
    %c0_i32_0 = arith.constant 0 : i32
    %c0_i32_1 = arith.constant 0 : i32
    return %c0_i32, %c0_i32_0 : i32, i32
  }
  func.func @transform_10(%arg0: i32) -> (i32, i32) {
    %c0_i32 = arith.constant 0 : i32
    %c0_i32_0 = arith.constant 0 : i32
    %c0_i32_1 = arith.constant 0 : i32
    return %c0_i32, %c0_i32_0 : i32, i32
  }
  func.func @transform_11(%arg0: i32) -> (i32, i32) {
    %c0_i32 = arith.constant 0 : i32
    %c0_i32_0 = arith.constant 0 : i32
    %c0_i32_1 = arith.constant 0 : i32
    return %c0_i32, %c0_i32_0 : i32, i32
  }
  func.func @transform_12(%arg0: i32) -> (i32, i32) {
    %c0_i32 = arith.constant 0 : i32
    %c0_i32_0 = arith.constant 0 : i32
    %c0_i32_1 = arith.constant 0 : i32
    return %c0_i32, %c0_i32_0 : i32, i32
  }
  func.func @transform_13(%arg0: i32) -> (i32, i32) {
    %c0_i32 = arith.constant 0 : i32
    %c0_i32_0 = arith.constant 0 : i32
    %c0_i32_1 = arith.constant 0 : i32
    return %c0_i32, %c0_i32_0 : i32, i32
  }
  func.func @transform_14(%arg0: i32) -> (i32, i32) {
    %c0_i32 = arith.constant 0 : i32
    %c0_i32_0 = arith.constant 0 : i32
    %c0_i32_1 = arith.constant 0 : i32
    return %c0_i32, %c0_i32_0 : i32, i32
  }
  func.func @transform_15(%arg0: i32) -> (i32, i32) {
    %c0_i32 = arith.constant 0 : i32
    %c0_i32_0 = arith.constant 0 : i32
    return %arg0, %c0_i32 : i32, i32
  }
}

</mosaic_0001>

<llo_original>
// kernel: tpu_custom_call.1
$region0: #{tpu_custom_call.1}
  #allocation0 [shape = 'u32[]', space=smem, size = 0x4, offset = 0x4, fixed_abs, tag = 'smem constant byte address 0x4 - core index']
  #allocation1 [shape = 'u32[144,128]{1,0:T(1,128)}', space=vmem, size = 0x12000, scoped, tag = 'internal scratch']
  #allocation2 [shape = 'f32[1,1]{1,0:T(1,128)S(1)}', space=vmem, size = 0x200, scoped, tag = 'scoped memory for tpu_custom_call.1']
  %s0 = inlined_call_operand.hbm [shape: f32[16,34], index: 0, kind: input, shape index: {}]
  %s1 = inlined_call_operand.hbm [shape: bf16[34,2048], index: 1, kind: input, shape index: {}]
  %s2 = inlined_call_operand.hbm [shape: f32[1,1024], index: 2, kind: input, shape index: {}]
  %s3 = inlined_call_operand.hbm [shape: bf16[1024,256], index: 3, kind: input, shape index: {}]
  %s4 = inlined_call_operand.hbm [shape: f32[1,256], index: 4, kind: input, shape index: {}]
  %s5 = inlined_call_operand.vmem [shape: bf16[256,128], index: 5, kind: input, shape index: {}]
  %s6 = inlined_call_operand.hbm [shape: f32[1,128], index: 6, kind: input, shape index: {}]
  %s7 = inlined_call_operand.vmem [shape: bf16[128,64], index: 7, kind: input, shape index: {}]
  %s8 = inlined_call_operand.hbm [shape: f32[1,64], index: 8, kind: input, shape index: {}]
  %s9 = inlined_call_operand.vmem [shape: bf16[64,32], index: 9, kind: input, shape index: {}]
  %s10 = inlined_call_operand.vmem [shape: f32[1,32], index: 10, kind: input, shape index: {}]
  %s11 = inlined_call_operand.vmem [shape: bf16[32,16], index: 11, kind: input, shape index: {}]
  %s12 = inlined_call_operand.vmem [shape: f32[1,16], index: 12, kind: input, shape index: {}]
  %s13 = inlined_call_operand.vmem [shape: f32[1,16], index: 13, kind: input, shape index: {}]
  %s14 = inlined_call_operand.<no memory space> [shape: f32[1,1], index: 14, kind: input, shape index: {}]
  %s15 = inlined_call_operand.hbm [shape: f32[1,16], index: 15, kind: output, shape index: {}]
  %s16 = sld [smem:[#allocation0]]
  $region98: #{tpu_custom_call.1} parent=0
    _
  %s18 = ssub.s32 1, %s16
  %s19 = scalar_select 0, %s18, %s16
  %v20 = vstv %s14
  %21 = vst [vmem:[#allocation2] sm:$0x1] %v20
  $region1: #{tpu_custom_call.1} parent=0
    #allocation3 [shape = 'u8[8192]{0}', space=vmem, size = 0x2000, scoped, tag = 'input window, operand 0, single buffered']
    #allocation4 [shape = 's32[1]{0}', space=sflag, size = 0x4, scoped, tag = 'scoped memory for tpu_custom_call.1']
    #allocation5 [shape = 's32[1]{0}', space=sflag, size = 0x4, scoped, tag = 'scoped memory for tpu_custom_call.1']
    #allocation6 [shape = 'u8[163840]{0}', space=vmem, size = 0x28000, scoped, tag = 'input window, operand 1, single buffered']
    #allocation7 [shape = 's32[1]{0}', space=sflag, size = 0x4, scoped, tag = 'scoped memory for tpu_custom_call.1']
    #allocation8 [shape = 'u8[4096]{0}', space=vmem, size = 0x1000, scoped, tag = 'input window, operand 2, single buffered']
    #allocation9 [shape = 'u8[524288]{0}', space=vmem, size = 0x80000, scoped, tag = 'input window, operand 3, single buffered']
    #allocation10 [shape = 's32[1]{0}', space=sflag, size = 0x4, scoped, tag = 'scoped memory for tpu_custom_call.1']
    #allocation11 [shape = 'u8[1024]{0}', space=vmem, size = 0x400, scoped, tag = 'input window, operand 4, single buffered']
    #allocation12 [shape = 'u8[512]{0}', space=vmem, size = 0x400, scoped, tag = 'input window, operand 6, single buffered']
    #allocation13 [shape = 's32[1]{0}', space=sflag, size = 0x4, scoped, tag = 'scoped memory for tpu_custom_call.1']
    #allocation14 [shape = 'u8[512]{0}', space=vmem, size = 0x400, scoped, tag = 'input window, operand 8, single buffered']
    #allocation15 [shape = 'u8[512]{0}', space=vmem, size = 0x400, scoped, tag = 'output window, operand 0, single buffered']
    %22 = vsyncpa [#allocation4], 0
    %23 = vsyncpa [#allocation7], 0
    %24 = vsyncpa [#allocation10], 0
    %25 = vsyncpa [#allocation13], 0
    %26 = vsyncpa [#allocation5], 0
    // Predicated region
    $region2: #{tpu_custom_call.1} parent=1 // pred_check
      _
    $region3: #{tpu_custom_call.1} parent=1 // pred_check_branch
      %28 = sbr.rel (0) target = $region5
    $region4: #{tpu_custom_call.1} parent=1 // pred_region
      %s30 = ssub.s32 256, 256
      %31 = vsyncadd [#allocation4], %s30
      %s32 = sshll.u32 [#allocation3], 4
      %s33 = int_to_ptr.vmem [resolvable:$true] %s32
      %38 = dma.hbm_to_vmem [thread:$0]  %s0, 256, %s33, [#allocation4], 128, 128, 8
    $region5: #{tpu_custom_call.1} parent=1 // pred_fallthru
      _
    // Predicated region
    $region6: #{tpu_custom_call.1} parent=1 // pred_check
      _
    $region7: #{tpu_custom_call.1} parent=1 // pred_check_branch
      %40 = sbr.rel (0) target = $region9
    $region8: #{tpu_custom_call.1} parent=1 // pred_region
      %s42 = ssub.s32 5120, 5120
      %43 = vsyncadd [#allocation7], %s42
      %s44 = sshll.u32 [#allocation6], 4
      %s45 = int_to_ptr.vmem [resolvable:$true] %s44
      %50 = dma.hbm_to_vmem [thread:$0]  %s1, 5120, %s45, [#allocation7], 1024, 1024, 64
    $region9: #{tpu_custom_call.1} parent=1 // pred_fallthru
      _
    // Predicated region
    $region10: #{tpu_custom_call.1} parent=1 // pred_check
      _
    $region11: #{tpu_custom_call.1} parent=1 // pred_check_branch
      %52 = sbr.rel (0) target = $region13
    $region12: #{tpu_custom_call.1} parent=1 // pred_region
      %s54 = ssub.s32 128, 128
      %55 = vsyncadd [#allocation7], %s54
      %s57 = sshll.u32 [#allocation8], 4
      %s58 = int_to_ptr.vmem [resolvable:$true] %s57
      %60 = dma.hbm_to_vmem [thread:$0]  %s2, 128, %s58, [#allocation7]
    $region13: #{tpu_custom_call.1} parent=1 // pred_fallthru
      _
    // Predicated region
    $region14: #{tpu_custom_call.1} parent=1 // pred_check
      _
    $region15: #{tpu_custom_call.1} parent=1 // pred_check_branch
      %62 = sbr.rel (0) target = $region17
    $region16: #{tpu_custom_call.1} parent=1 // pred_region
      %s64 = ssub.s32 16384, 16384
      %65 = vsyncadd [#allocation10], %s64
      %s66 = sshll.u32 [#allocation9], 4
      %s67 = int_to_ptr.vmem [resolvable:$true] %s66
      %72 = dma.hbm_to_vmem [thread:$0]  %s3, 16384, %s67, [#allocation10], 128, 128, 8
    $region17: #{tpu_custom_call.1} parent=1 // pred_fallthru
      _
    // Predicated region
    $region18: #{tpu_custom_call.1} parent=1 // pred_check
      _
    $region19: #{tpu_custom_call.1} parent=1 // pred_check_branch
      %74 = sbr.rel (0) target = $region21
    $region20: #{tpu_custom_call.1} parent=1 // pred_region
      %s76 = ssub.s32 32, 32
      %77 = vsyncadd [#allocation10], %s76
      %s79 = sshll.u32 [#allocation11], 4
      %s80 = int_to_ptr.vmem [resolvable:$true] %s79
      %82 = dma.hbm_to_vmem [thread:$0]  %s4, 32, %s80, [#allocation10]
    $region21: #{tpu_custom_call.1} parent=1 // pred_fallthru
      _
    // Predicated region
    $region22: #{tpu_custom_call.1} parent=1 // pred_check
      _
    $region23: #{tpu_custom_call.1} parent=1 // pred_check_branch
      %84 = sbr.rel (0) target = $region25
    $region24: #{tpu_custom_call.1} parent=1 // pred_region
      _
    $region25: #{tpu_custom_call.1} parent=1 // pred_fallthru
      _
    // Predicated region
    $region26: #{tpu_custom_call.1} parent=1 // pred_check
      _
    $region27: #{tpu_custom_call.1} parent=1 // pred_check_branch
      %86 = sbr.rel (0) target = $region29
    $region28: #{tpu_custom_call.1} parent=1 // pred_region
      %s88 = ssub.s32 16, 16
      %89 = vsyncadd [#allocation13], %s88
      %s91 = sshll.u32 [#allocation12], 4
      %s92 = int_to_ptr.vmem [resolvable:$true] %s91
      %94 = dma.hbm_to_vmem [thread:$0]  %s6, 16, %s92, [#allocation13]
    $region29: #{tpu_custom_call.1} parent=1 // pred_fallthru
      _
    // Predicated region
    $region30: #{tpu_custom_call.1} parent=1 // pred_check
      _
    $region31: #{tpu_custom_call.1} parent=1 // pred_check_branch
      %96 = sbr.rel (0) target = $region33
    $region32: #{tpu_custom_call.1} parent=1 // pred_region
      _
    $region33: #{tpu_custom_call.1} parent=1 // pred_fallthru
      _
    // Predicated region
    $region34: #{tpu_custom_call.1} parent=1 // pred_check
      _
    $region35: #{tpu_custom_call.1} parent=1 // pred_check_branch
      %98 = sbr.rel (0) target = $region37
    $region36: #{tpu_custom_call.1} parent=1 // pred_region
      %s100 = ssub.s32 16, 16
      %101 = vsyncadd [#allocation13], %s100
      %s103 = sshll.u32 [#allocation14], 4
      %s104 = int_to_ptr.vmem [resolvable:$true] %s103
      %106 = dma.hbm_to_vmem [thread:$0]  %s8, 16, %s104, [#allocation13]
    $region37: #{tpu_custom_call.1} parent=1 // pred_fallthru
      _
    // Predicated region
    $region38: #{tpu_custom_call.1} parent=1 // pred_check
      _
    $region39: #{tpu_custom_call.1} parent=1 // pred_check_branch
      %108 = sbr.rel (0) target = $region41
    $region40: #{tpu_custom_call.1} parent=1 // pred_region
      _
    $region41: #{tpu_custom_call.1} parent=1 // pred_fallthru
      _
    // Predicated region
    $region42: #{tpu_custom_call.1} parent=1 // pred_check
      _
    $region43: #{tpu_custom_call.1} parent=1 // pred_check_branch
      %110 = sbr.rel (0) target = $region45
    $region44: #{tpu_custom_call.1} parent=1 // pred_region
      _
    $region45: #{tpu_custom_call.1} parent=1 // pred_fallthru
      _
    // Predicated region
    $region46: #{tpu_custom_call.1} parent=1 // pred_check
      _
    $region47: #{tpu_custom_call.1} parent=1 // pred_check_branch
      %112 = sbr.rel (0) target = $region49
    $region48: #{tpu_custom_call.1} parent=1 // pred_region
      _
    $region49: #{tpu_custom_call.1} parent=1 // pred_fallthru
      _
    // Predicated region
    $region50: #{tpu_custom_call.1} parent=1 // pred_check
      _
    $region51: #{tpu_custom_call.1} parent=1 // pred_check_branch
      %114 = sbr.rel (0) target = $region53
    $region52: #{tpu_custom_call.1} parent=1 // pred_region
      _
    $region53: #{tpu_custom_call.1} parent=1 // pred_fallthru
      _
    // Predicated region
    $region54: #{tpu_custom_call.1} parent=1 // pred_check
      _
    $region55: #{tpu_custom_call.1} parent=1 // pred_check_branch
      %116 = sbr.rel (0) target = $region57
    $region56: #{tpu_custom_call.1} parent=1 // pred_region
      _
    $region57: #{tpu_custom_call.1} parent=1 // pred_fallthru
      _
    // Predicated region
    $region58: #{tpu_custom_call.1} parent=1 // pred_check
      _
    $region59: #{tpu_custom_call.1} parent=1 // pred_check_branch
      %118 = sbr.rel (0) target = $region61
    $region60: #{tpu_custom_call.1} parent=1 // pred_region
      _
    $region61: #{tpu_custom_call.1} parent=1 // pred_fallthru
      _
    // Predicated region
    $region62: #{tpu_custom_call.1} parent=1 // pred_check
      _
    $region63: #{tpu_custom_call.1} parent=1 // pred_check_branch
      %120 = sbr.rel (0) target = $region65
    $region64: #{tpu_custom_call.1} parent=1 // pred_region
      %121 = dma.done [#allocation4], 256
    $region65: #{tpu_custom_call.1} parent=1 // pred_fallthru
      _
    // Predicated region
    $region66: #{tpu_custom_call.1} parent=1 // pred_check
      _
    $region67: #{tpu_custom_call.1} parent=1 // pred_check_branch
      %123 = sbr.rel (0) target = $region69
    $region68: #{tpu_custom_call.1} parent=1 // pred_region
      %124 = dma.done [#allocation7], 5120
    $region69: #{tpu_custom_call.1} parent=1 // pred_fallthru
      _
    // Predicated region
    $region70: #{tpu_custom_call.1} parent=1 // pred_check
      _
    $region71: #{tpu_custom_call.1} parent=1 // pred_check_branch
      %126 = sbr.rel (0) target = $region73
    $region72: #{tpu_custom_call.1} parent=1 // pred_region
      %127 = dma.done [#allocation7], 128
    $region73: #{tpu_custom_call.1} parent=1 // pred_fallthru
      _
    // Predicated region
    $region74: #{tpu_custom_call.1} parent=1 // pred_check
      _
    $region75: #{tpu_custom_call.1} parent=1 // pred_check_branch
      %129 = sbr.rel (0) target = $region77
    $region76: #{tpu_custom_call.1} parent=1 // pred_region
      %130 = dma.done [#allocation10], 16384
    $region77: #{tpu_custom_call.1} parent=1 // pred_fallthru
      _
    // Predicated region
    $region78: #{tpu_custom_call.1} parent=1 // pred_check
      _
    $region79: #{tpu_custom_call.1} parent=1 // pred_check_branch
      %132 = sbr.rel (0) target = $region81
    $region80: #{tpu_custom_call.1} parent=1 // pred_region
      %133 = dma.done [#allocation10], 32
    $region81: #{tpu_custom_call.1} parent=1 // pred_fallthru
      _
    // Predicated region
    $region82: #{tpu_custom_call.1} parent=1 // pred_check
      _
    $region83: #{tpu_custom_call.1} parent=1 // pred_check_branch
      %135 = sbr.rel (0) target = $region85
    $region84: #{tpu_custom_call.1} parent=1 // pred_region
      %136 = dma.done [#allocation13], 16
    $region85: #{tpu_custom_call.1} parent=1 // pred_fallthru
      _
    // Predicated region
    $region86: #{tpu_custom_call.1} parent=1 // pred_check
      _
    $region87: #{tpu_custom_call.1} parent=1 // pred_check_branch
      %138 = sbr.rel (0) target = $region89
    $region88: #{tpu_custom_call.1} parent=1 // pred_region
      %139 = dma.done [#allocation13], 16
    $region89: #{tpu_custom_call.1} parent=1 // pred_fallthru
      _
    %v141 = vld [vmem:[#allocation3] sm:$0xff]
    %v142 = vld [vmem:[#allocation3 + $0x8] sm:$0xff]
    %v143 = vpack.c.bf16 %v142, %v141
    %v144 = vld [vmem:[#allocation6] sm:$0xff]
    %v145 = vld [vmem:[#allocation6 + $0x8] sm:$0xff]
    %v146 = vld [vmem:[#allocation6 + $0x10] sm:$0xff]
    %v147 = vld [vmem:[#allocation6 + $0x18] sm:$0xff]
    %v148 = vld [vmem:[#allocation6 + $0x20] sm:$0xff]
    %v149 = vld [vmem:[#allocation6 + $0x28] sm:$0xff]
    %v150 = vld [vmem:[#allocation6 + $0x30] sm:$0xff]
    %v151 = vld [vmem:[#allocation6 + $0x38] sm:$0xff]
    %v152 = vld [vmem:[#allocation6 + $0x40] sm:$0xff]
    %v153 = vld [vmem:[#allocation6 + $0x48] sm:$0xff]
    %v154 = vld [vmem:[#allocation6 + $0x50] sm:$0xff]
    %v155 = vld [vmem:[#allocation6 + $0x58] sm:$0xff]
    %v156 = vld [vmem:[#allocation6 + $0x60] sm:$0xff]
    %v157 = vld [vmem:[#allocation6 + $0x68] sm:$0xff]
    %v158 = vld [vmem:[#allocation6 + $0x70] sm:$0xff]
    %v159 = vld [vmem:[#allocation6 + $0x78] sm:$0xff]
    %v160 = vld [vmem:[#allocation6 + $0x80] sm:$0xff]
    %v161 = vld [vmem:[#allocation6 + $0x88] sm:$0xff]
    %v162 = vld [vmem:[#allocation6 + $0x90] sm:$0xff]
    %v163 = vld [vmem:[#allocation6 + $0x98] sm:$0xff]
    %v164 = vld [vmem:[#allocation6 + $0xa0] sm:$0xff]
    %v165 = vld [vmem:[#allocation6 + $0xa8] sm:$0xff]
    %v166 = vld [vmem:[#allocation6 + $0xb0] sm:$0xff]
    %v167 = vld [vmem:[#allocation6 + $0xb8] sm:$0xff]
    %v168 = vld [vmem:[#allocation6 + $0xc0] sm:$0xff]
    %v169 = vld [vmem:[#allocation6 + $0xc8] sm:$0xff]
    %v170 = vld [vmem:[#allocation6 + $0xd0] sm:$0xff]
    %v171 = vld [vmem:[#allocation6 + $0xd8] sm:$0xff]
    %v172 = vld [vmem:[#allocation6 + $0xe0] sm:$0xff]
    %v173 = vld [vmem:[#allocation6 + $0xe8] sm:$0xff]
    %v174 = vld [vmem:[#allocation6 + $0xf0] sm:$0xff]
    %v175 = vld [vmem:[#allocation6 + $0xf8] sm:$0xff]
    %v176 = vld [vmem:[#allocation6 + $0x100] sm:$0x11]
    %v177 = vld [vmem:[#allocation6 + $0x108] sm:$0x11]
    %v178 = vld [vmem:[#allocation6 + $0x110] sm:$0x11]
    %v179 = vld [vmem:[#allocation6 + $0x118] sm:$0x11]
    %v180 = vld [vmem:[#allocation6 + $0x120] sm:$0x11]
    %v181 = vld [vmem:[#allocation6 + $0x128] sm:$0x11]
    %v182 = vld [vmem:[#allocation6 + $0x130] sm:$0x11]
    %v183 = vld [vmem:[#allocation6 + $0x138] sm:$0x11]
    %v224 = vunpack.c.l.b16 %v144
    %v225 = vunpack.c.h.b16 %v144
    %v226 = vunpack.c.l.b16 %v145
    %v227 = vunpack.c.h.b16 %v145
    %v228 = vunpack.c.l.b16 %v146
    %v229 = vunpack.c.h.b16 %v146
    %v230 = vunpack.c.l.b16 %v147
    %v231 = vunpack.c.h.b16 %v147
    %v232 = vunpack.c.l.b16 %v148
    %v233 = vunpack.c.h.b16 %v148
    %v234 = vunpack.c.l.b16 %v149
    %v235 = vunpack.c.h.b16 %v149
    %v236 = vunpack.c.l.b16 %v150
    %v237 = vunpack.c.h.b16 %v150
    %v238 = vunpack.c.l.b16 %v151
    %v239 = vunpack.c.h.b16 %v151
    %v240 = vunpack.c.l.b16 %v152
    %v241 = vunpack.c.h.b16 %v152
    %v242 = vunpack.c.l.b16 %v153
    %v243 = vunpack.c.h.b16 %v153
    %v244 = vunpack.c.l.b16 %v154
    %v245 = vunpack.c.h.b16 %v154
    %v246 = vunpack.c.l.b16 %v155
    %v247 = vunpack.c.h.b16 %v155
    %v248 = vunpack.c.l.b16 %v156
    %v249 = vunpack.c.h.b16 %v156
    %v250 = vunpack.c.l.b16 %v157
    %v251 = vunpack.c.h.b16 %v157
    %v252 = vunpack.c.l.b16 %v158
    %v253 = vunpack.c.h.b16 %v158
    %v254 = vunpack.c.l.b16 %v159
    %v255 = vunpack.c.h.b16 %v159
    %v256 = vunpack.c.l.b16 %v160
    %v257 = vunpack.c.h.b16 %v160
    %v258 = vunpack.c.l.b16 %v161
    %v259 = vunpack.c.h.b16 %v161
    %v260 = vunpack.c.l.b16 %v162
    %v261 = vunpack.c.h.b16 %v162
    %v262 = vunpack.c.l.b16 %v163
    %v263 = vunpack.c.h.b16 %v163
    %v264 = vunpack.c.l.b16 %v164
    %v265 = vunpack.c.h.b16 %v164
    %v266 = vunpack.c.l.b16 %v165
    %v267 = vunpack.c.h.b16 %v165
    %v268 = vunpack.c.l.b16 %v166
    %v269 = vunpack.c.h.b16 %v166
    %v270 = vunpack.c.l.b16 %v167
    %v271 = vunpack.c.h.b16 %v167
    %v272 = vunpack.c.l.b16 %v168
    %v273 = vunpack.c.h.b16 %v168
    %v274 = vunpack.c.l.b16 %v169
    %v275 = vunpack.c.h.b16 %v169
    %v276 = vunpack.c.l.b16 %v170
    %v277 = vunpack.c.h.b16 %v170
    %v278 = vunpack.c.l.b16 %v171
    %v279 = vunpack.c.h.b16 %v171
    %v280 = vunpack.c.l.b16 %v172
    %v281 = vunpack.c.h.b16 %v172
    %v282 = vunpack.c.l.b16 %v173
    %v283 = vunpack.c.h.b16 %v173
    %v284 = vunpack.c.l.b16 %v174
    %v285 = vunpack.c.h.b16 %v174
    %v286 = vunpack.c.l.b16 %v175
    %v287 = vunpack.c.h.b16 %v175
    %v288 = vunpack.c.l.b16 %v176
    %v289 = vunpack.c.h.b16 %v176
    %v290 = vunpack.c.l.b16 %v177
    %v291 = vunpack.c.h.b16 %v177
    %v292 = vunpack.c.l.b16 %v178
    %v293 = vunpack.c.h.b16 %v178
    %v294 = vunpack.c.l.b16 %v179
    %v295 = vunpack.c.h.b16 %v179
    %v296 = vunpack.c.l.b16 %v180
    %v297 = vunpack.c.h.b16 %v180
    %v298 = vunpack.c.l.b16 %v181
    %v299 = vunpack.c.h.b16 %v181
    %v300 = vunpack.c.l.b16 %v182
    %v301 = vunpack.c.h.b16 %v182
    %v302 = vunpack.c.l.b16 %v183
    %v303 = vunpack.c.h.b16 %v183
    %v304 = vpack.c.b16 %v240, %v224
    %v305 = vpack.c.b16 %v241, %v225
    %v306 = vpack.c.b16 %v242, %v226
    %v307 = vpack.c.b16 %v243, %v227
    %v308 = vpack.c.b16 %v244, %v228
    %v309 = vpack.c.b16 %v245, %v229
    %v310 = vpack.c.b16 %v246, %v230
    %v311 = vpack.c.b16 %v247, %v231
    %v312 = vpack.c.b16 %v248, %v232
    %v313 = vpack.c.b16 %v249, %v233
    %v314 = vpack.c.b16 %v250, %v234
    %v315 = vpack.c.b16 %v251, %v235
    %v316 = vpack.c.b16 %v252, %v236
    %v317 = vpack.c.b16 %v253, %v237
    %v318 = vpack.c.b16 %v254, %v238
    %v319 = vpack.c.b16 %v255, %v239
    %v320 = vpack.c.b16 %v272, %v256
    %v321 = vpack.c.b16 %v273, %v257
    %v322 = vpack.c.b16 %v274, %v258
    %v323 = vpack.c.b16 %v275, %v259
    %v324 = vpack.c.b16 %v276, %v260
    %v325 = vpack.c.b16 %v277, %v261
    %v326 = vpack.c.b16 %v278, %v262
    %v327 = vpack.c.b16 %v279, %v263
    %v328 = vpack.c.b16 %v280, %v264
    %v329 = vpack.c.b16 %v281, %v265
    %v330 = vpack.c.b16 %v282, %v266
    %v331 = vpack.c.b16 %v283, %v267
    %v332 = vpack.c.b16 %v284, %v268
    %v333 = vpack.c.b16 %v285, %v269
    %v334 = vpack.c.b16 %v286, %v270
    %v335 = vpack.c.b16 %v287, %v271
    %v336 = vpack.c.b16 %v288, %v288
    %v337 = vpack.c.b16 %v289, %v289
    %v338 = vpack.c.b16 %v290, %v290
    %v339 = vpack.c.b16 %v291, %v291
    %v340 = vpack.c.b16 %v292, %v292
    %v341 = vpack.c.b16 %v293, %v293
    %v342 = vpack.c.b16 %v294, %v294
    %v343 = vpack.c.b16 %v295, %v295
    %v344 = vpack.c.b16 %v296, %v296
    %v345 = vpack.c.b16 %v297, %v297
    %v346 = vpack.c.b16 %v298, %v298
    %v347 = vpack.c.b16 %v299, %v299
    %v348 = vpack.c.b16 %v300, %v300
    %v349 = vpack.c.b16 %v301, %v301
    %v350 = vpack.c.b16 %v302, %v302
    %v351 = vpack.c.b16 %v303, %v303
    %vm384 = vcmask 277504
    %v386 = vsel %vm384, %v143, 0
    %vm388 = vcmask 1040384
    %v390 = vsel %vm388, %v336, 0
    %v393 = vsel %vm388, %v337, 0
    %v396 = vsel %vm388, %v338, 0
    %v399 = vsel %vm388, %v339, 0
    %v402 = vsel %vm388, %v340, 0
    %v405 = vsel %vm388, %v341, 0
    %v408 = vsel %vm388, %v342, 0
    %v411 = vsel %vm388, %v343, 0
    %v414 = vsel %vm388, %v344, 0
    %v417 = vsel %vm388, %v345, 0
    %v420 = vsel %vm388, %v346, 0
    %v423 = vsel %vm388, %v347, 0
    %v426 = vsel %vm388, %v348, 0
    %v429 = vsel %vm388, %v349, 0
    %v432 = vsel %vm388, %v350, 0
    %v435 = vsel %vm388, %v351, 0
    %437 = vmatprep.subr.bf16.mxu0 0
    %438 = vmatpush1.bf16.msra.mxu0 0
    %439 = vmatprep.subr.bf16.mxu0 0
    %440 = vmatpush1.bf16.msra.mxu0 0
    %441 = vmatprep.subr.bf16.mxu0 0
    %442 = vmatpush1.bf16.msra.mxu0 0
    %443 = vmatprep.subr.bf16.mxu0 0
    %444 = vmatpush1.bf16.msra.mxu0 0
    %445 = vmatprep.subr.bf16.mxu0 0
    %446 = vmatpush1.bf16.msra.mxu0 0
    %447 = vmatprep.subr.bf16.mxu0 %v393
    %448 = vmatpush1.bf16.msra.mxu0 %v390
    %449 = vmatprep.subr.bf16.mxu0 %v321
    %450 = vmatpush1.bf16.msra.mxu0 %v320
    %451 = vmatprep.subr.bf16.mxu0 %v305
    %452 = vmatpush1.bf16.msra.mxu0 %v304
    %453 = vmatprep.subr.bf16.mxu0 0
    %454 = vmatpush2.bf16.msra.mxu0 0
    %455 = vmatprep.subr.bf16.mxu0 0
    %456 = vmatpush2.bf16.msra.mxu0 0
    %457 = vmatprep.subr.bf16.mxu0 0
    %458 = vmatpush2.bf16.msra.mxu0 0
    %459 = vmatprep.subr.bf16.mxu0 0
    %460 = vmatpush2.bf16.msra.mxu0 0
    %461 = vmatprep.subr.bf16.mxu0 0
    %462 = vmatpush2.bf16.msra.mxu0 0
    %463 = vmatprep.subr.bf16.mxu0 0
    %464 = vmatpush2.bf16.msra.mxu0 0
    %465 = vmatprep.subr.bf16.mxu0 0
    %466 = vmatpush2.bf16.msra.mxu0 0
    %467 = vmatprep.subr.bf16.mxu0 0
    %468 = vmatpush2.bf16.msra.mxu0 0
    %469 = vmatprep.mubr.bf16.mxu0 0
    %470 = vmatmul.mubr.bf16.gmra.mxu0 %v386
    %v471 = vpop.f32.mrf.mxu0
    %v472 = vadd.f32 0.0, %v471
    %v473 = vpop.f32.mrf.mxu0
    %v474 = vadd.f32 0.0, %v473
    %v475 = vpop.f32.mrf.mxu0
    %v476 = vadd.f32 0.0, %v475
    %v477 = vpop.f32.mrf.mxu0
    %v478 = vadd.f32 0.0, %v477
    %479 = vdwg.mxu0
    %480 = vmatprep.subr.bf16.mxu0 0
    %481 = vmatpush1.bf16.msra.mxu0 0
    %482 = vmatprep.subr.bf16.mxu0 0
    %483 = vmatpush1.bf16.msra.mxu0 0
    %484 = vmatprep.subr.bf16.mxu0 0
    %485 = vmatpush1.bf16.msra.mxu0 0
    %486 = vmatprep.subr.bf16.mxu0 0
    %487 = vmatpush1.bf16.msra.mxu0 0
    %488 = vmatprep.subr.bf16.mxu0 0
    %489 = vmatpush1.bf16.msra.mxu0 0
    %490 = vmatprep.subr.bf16.mxu0 %v399
    %491 = vmatpush1.bf16.msra.mxu0 %v396
    %492 = vmatprep.subr.bf16.mxu0 %v323
    %493 = vmatpush1.bf16.msra.mxu0 %v322
    %494 = vmatprep.subr.bf16.mxu0 %v307
    %495 = vmatpush1.bf16.msra.mxu0 %v306
    %496 = vmatprep.subr.bf16.mxu0 0
    %497 = vmatpush2.bf16.msra.mxu0 0
    %498 = vmatprep.subr.bf16.mxu0 0
    %499 = vmatpush2.bf16.msra.mxu0 0
    %500 = vmatprep.subr.bf16.mxu0 0
    %501 = vmatpush2.bf16.msra.mxu0 0
    %502 = vmatprep.subr.bf16.mxu0 0
    %503 = vmatpush2.bf16.msra.mxu0 0
    %504 = vmatprep.subr.bf16.mxu0 0
    %505 = vmatpush2.bf16.msra.mxu0 0
    %506 = vmatprep.subr.bf16.mxu0 0
    %507 = vmatpush2.bf16.msra.mxu0 0
    %508 = vmatprep.subr.bf16.mxu0 0
    %509 = vmatpush2.bf16.msra.mxu0 0
    %510 = vmatprep.subr.bf16.mxu0 0
    %511 = vmatpush2.bf16.msra.mxu0 0
    %512 = vmatprep.mubr.bf16.mxu0 0
    %513 = vmatmul.mubr.bf16.gmra.mxu0 %v386
    %v514 = vpop.f32.mrf.mxu0
    %v515 = vadd.f32 0.0, %v514
    %v516 = vpop.f32.mrf.mxu0
    %v517 = vadd.f32 0.0, %v516
    %v518 = vpop.f32.mrf.mxu0
    %v519 = vadd.f32 0.0, %v518
    %v520 = vpop.f32.mrf.mxu0
    %v521 = vadd.f32 0.0, %v520
    %522 = vdwg.mxu0
    %523 = vmatprep.subr.bf16.mxu0 0
    %524 = vmatpush1.bf16.msra.mxu0 0
    %525 = vmatprep.subr.bf16.mxu0 0
    %526 = vmatpush1.bf16.msra.mxu0 0
    %527 = vmatprep.subr.bf16.mxu0 0
    %528 = vmatpush1.bf16.msra.mxu0 0
    %529 = vmatprep.subr.bf16.mxu0 0
    %530 = vmatpush1.bf16.msra.mxu0 0
    %531 = vmatprep.subr.bf16.mxu0 0
    %532 = vmatpush1.bf16.msra.mxu0 0
    %533 = vmatprep.subr.bf16.mxu0 %v405
    %534 = vmatpush1.bf16.msra.mxu0 %v402
    %535 = vmatprep.subr.bf16.mxu0 %v325
    %536 = vmatpush1.bf16.msra.mxu0 %v324
    %537 = vmatprep.subr.bf16.mxu0 %v309
    %538 = vmatpush1.bf16.msra.mxu0 %v308
    %539 = vmatprep.subr.bf16.mxu0 0
    %540 = vmatpush2.bf16.msra.mxu0 0
    %541 = vmatprep.subr.bf16.mxu0 0
    %542 = vmatpush2.bf16.msra.mxu0 0
    %543 = vmatprep.subr.bf16.mxu0 0
    %544 = vmatpush2.bf16.msra.mxu0 0
    %545 = vmatprep.subr.bf16.mxu0 0
    %546 = vmatpush2.bf16.msra.mxu0 0
    %547 = vmatprep.subr.bf16.mxu0 0
    %548 = vmatpush2.bf16.msra.mxu0 0
    %549 = vmatprep.subr.bf16.mxu0 0
    %550 = vmatpush2.bf16.msra.mxu0 0
    %551 = vmatprep.subr.bf16.mxu0 0
    %552 = vmatpush2.bf16.msra.mxu0 0
    %553 = vmatprep.subr.bf16.mxu0 0
    %554 = vmatpush2.bf16.msra.mxu0 0
    %555 = vmatprep.mubr.bf16.mxu0 0
    %556 = vmatmul.mubr.bf16.gmra.mxu0 %v386
    %v557 = vpop.f32.mrf.mxu0
    %v558 = vadd.f32 0.0, %v557
    %v559 = vpop.f32.mrf.mxu0
    %v560 = vadd.f32 0.0, %v559
    %v561 = vpop.f32.mrf.mxu0
    %v562 = vadd.f32 0.0, %v561
    %v563 = vpop.f32.mrf.mxu0
    %v564 = vadd.f32 0.0, %v563
    %565 = vdwg.mxu0
    %566 = vmatprep.subr.bf16.mxu0 0
    %567 = vmatpush1.bf16.msra.mxu0 0
    %568 = vmatprep.subr.bf16.mxu0 0
    %569 = vmatpush1.bf16.msra.mxu0 0
    %570 = vmatprep.subr.bf16.mxu0 0
    %571 = vmatpush1.bf16.msra.mxu0 0
    %572 = vmatprep.subr.bf16.mxu0 0
    %573 = vmatpush1.bf16.msra.mxu0 0
    %574 = vmatprep.subr.bf16.mxu0 0
    %575 = vmatpush1.bf16.msra.mxu0 0
    %576 = vmatprep.subr.bf16.mxu0 %v411
    %577 = vmatpush1.bf16.msra.mxu0 %v408
    %578 = vmatprep.subr.bf16.mxu0 %v327
    %579 = vmatpush1.bf16.msra.mxu0 %v326
    %580 = vmatprep.subr.bf16.mxu0 %v311
    %581 = vmatpush1.bf16.msra.mxu0 %v310
    %582 = vmatprep.subr.bf16.mxu0 0
    %583 = vmatpush2.bf16.msra.mxu0 0
    %584 = vmatprep.subr.bf16.mxu0 0
    %585 = vmatpush2.bf16.msra.mxu0 0
    %586 = vmatprep.subr.bf16.mxu0 0
    %587 = vmatpush2.bf16.msra.mxu0 0
    %588 = vmatprep.subr.bf16.mxu0 0
    %589 = vmatpush2.bf16.msra.mxu0 0
    %590 = vmatprep.subr.bf16.mxu0 0
    %591 = vmatpush2.bf16.msra.mxu0 0
    %592 = vmatprep.subr.bf16.mxu0 0
    %593 = vmatpush2.bf16.msra.mxu0 0
    %594 = vmatprep.subr.bf16.mxu0 0
    %595 = vmatpush2.bf16.msra.mxu0 0
    %596 = vmatprep.subr.bf16.mxu0 0
    %597 = vmatpush2.bf16.msra.mxu0 0
    %598 = vmatprep.mubr.bf16.mxu0 0
    %599 = vmatmul.mubr.bf16.gmra.mxu0 %v386
    %v600 = vpop.f32.mrf.mxu0
    %v601 = vadd.f32 0.0, %v600
    %v602 = vpop.f32.mrf.mxu0
    %v603 = vadd.f32 0.0, %v602
    %v604 = vpop.f32.mrf.mxu0
    %v605 = vadd.f32 0.0, %v604
    %v606 = vpop.f32.mrf.mxu0
    %v607 = vadd.f32 0.0, %v606
    %608 = vdwg.mxu0
    %609 = vmatprep.subr.bf16.mxu0 0
    %610 = vmatpush1.bf16.msra.mxu0 0
    %611 = vmatprep.subr.bf16.mxu0 0
    %612 = vmatpush1.bf16.msra.mxu0 0
    %613 = vmatprep.subr.bf16.mxu0 0
    %614 = vmatpush1.bf16.msra.mxu0 0
    %615 = vmatprep.subr.bf16.mxu0 0
    %616 = vmatpush1.bf16.msra.mxu0 0
    %617 = vmatprep.subr.bf16.mxu0 0
    %618 = vmatpush1.bf16.msra.mxu0 0
    %619 = vmatprep.subr.bf16.mxu0 %v417
    %620 = vmatpush1.bf16.msra.mxu0 %v414
    %621 = vmatprep.subr.bf16.mxu0 %v329
    %622 = vmatpush1.bf16.msra.mxu0 %v328
    %623 = vmatprep.subr.bf16.mxu0 %v313
    %624 = vmatpush1.bf16.msra.mxu0 %v312
    %625 = vmatprep.subr.bf16.mxu0 0
    %626 = vmatpush2.bf16.msra.mxu0 0
    %627 = vmatprep.subr.bf16.mxu0 0
    %628 = vmatpush2.bf16.msra.mxu0 0
    %629 = vmatprep.subr.bf16.mxu0 0
    %630 = vmatpush2.bf16.msra.mxu0 0
    %631 = vmatprep.subr.bf16.mxu0 0
    %632 = vmatpush2.bf16.msra.mxu0 0
    %633 = vmatprep.subr.bf16.mxu0 0
    %634 = vmatpush2.bf16.msra.mxu0 0
    %635 = vmatprep.subr.bf16.mxu0 0
    %636 = vmatpush2.bf16.msra.mxu0 0
    %637 = vmatprep.subr.bf16.mxu0 0
    %638 = vmatpush2.bf16.msra.mxu0 0
    %639 = vmatprep.subr.bf16.mxu0 0
    %640 = vmatpush2.bf16.msra.mxu0 0
    %641 = vmatprep.mubr.bf16.mxu0 0
    %642 = vmatmul.mubr.bf16.gmra.mxu0 %v386
    %v643 = vpop.f32.mrf.mxu0
    %v644 = vadd.f32 0.0, %v643
    %v645 = vpop.f32.mrf.mxu0
    %v646 = vadd.f32 0.0, %v645
    %v647 = vpop.f32.mrf.mxu0
    %v648 = vadd.f32 0.0, %v647
    %v649 = vpop.f32.mrf.mxu0
    %v650 = vadd.f32 0.0, %v649
    %651 = vdwg.mxu0
    %652 = vmatprep.subr.bf16.mxu0 0
    %653 = vmatpush1.bf16.msra.mxu0 0
    %654 = vmatprep.subr.bf16.mxu0 0
    %655 = vmatpush1.bf16.msra.mxu0 0
    %656 = vmatprep.subr.bf16.mxu0 0
    %657 = vmatpush1.bf16.msra.mxu0 0
    %658 = vmatprep.subr.bf16.mxu0 0
    %659 = vmatpush1.bf16.msra.mxu0 0
    %660 = vmatprep.subr.bf16.mxu0 0
    %661 = vmatpush1.bf16.msra.mxu0 0
    %662 = vmatprep.subr.bf16.mxu0 %v423
    %663 = vmatpush1.bf16.msra.mxu0 %v420
    %664 = vmatprep.subr.bf16.mxu0 %v331
    %665 = vmatpush1.bf16.msra.mxu0 %v330
    %666 = vmatprep.subr.bf16.mxu0 %v315
    %667 = vmatpush1.bf16.msra.mxu0 %v314
    %668 = vmatprep.subr.bf16.mxu0 0
    %669 = vmatpush2.bf16.msra.mxu0 0
    %670 = vmatprep.subr.bf16.mxu0 0
    %671 = vmatpush2.bf16.msra.mxu0 0
    %672 = vmatprep.subr.bf16.mxu0 0
    %673 = vmatpush2.bf16.msra.mxu0 0
    %674 = vmatprep.subr.bf16.mxu0 0
    %675 = vmatpush2.bf16.msra.mxu0 0
    %676 = vmatprep.subr.bf16.mxu0 0
    %677 = vmatpush2.bf16.msra.mxu0 0
    %678 = vmatprep.subr.bf16.mxu0 0
    %679 = vmatpush2.bf16.msra.mxu0 0
    %680 = vmatprep.subr.bf16.mxu0 0
    %681 = vmatpush2.bf16.msra.mxu0 0
    %682 = vmatprep.subr.bf16.mxu0 0
    %683 = vmatpush2.bf16.msra.mxu0 0
    %684 = vmatprep.mubr.bf16.mxu0 0
    %685 = vmatmul.mubr.bf16.gmra.mxu0 %v386
    %v686 = vpop.f32.mrf.mxu0
    %v687 = vadd.f32 0.0, %v686
    %v688 = vpop.f32.mrf.mxu0
    %v689 = vadd.f32 0.0, %v688
    %v690 = vpop.f32.mrf.mxu0
    %v691 = vadd.f32 0.0, %v690
    %v692 = vpop.f32.mrf.mxu0
    %v693 = vadd.f32 0.0, %v692
    %694 = vdwg.mxu0
    %695 = vmatprep.subr.bf16.mxu0 0
    %696 = vmatpush1.bf16.msra.mxu0 0
    %697 = vmatprep.subr.bf16.mxu0 0
    %698 = vmatpush1.bf16.msra.mxu0 0
    %699 = vmatprep.subr.bf16.mxu0 0
    %700 = vmatpush1.bf16.msra.mxu0 0
    %701 = vmatprep.subr.bf16.mxu0 0
    %702 = vmatpush1.bf16.msra.mxu0 0
    %703 = vmatprep.subr.bf16.mxu0 0
    %704 = vmatpush1.bf16.msra.mxu0 0
    %705 = vmatprep.subr.bf16.mxu0 %v429
    %706 = vmatpush1.bf16.msra.mxu0 %v426
    %707 = vmatprep.subr.bf16.mxu0 %v333
    %708 = vmatpush1.bf16.msra.mxu0 %v332
    %709 = vmatprep.subr.bf16.mxu0 %v317
    %710 = vmatpush1.bf16.msra.mxu0 %v316
    %711 = vmatprep.subr.bf16.mxu0 0
    %712 = vmatpush2.bf16.msra.mxu0 0
    %713 = vmatprep.subr.bf16.mxu0 0
    %714 = vmatpush2.bf16.msra.mxu0 0
    %715 = vmatprep.subr.bf16.mxu0 0
    %716 = vmatpush2.bf16.msra.mxu0 0
    %717 = vmatprep.subr.bf16.mxu0 0
    %718 = vmatpush2.bf16.msra.mxu0 0
    %719 = vmatprep.subr.bf16.mxu0 0
    %720 = vmatpush2.bf16.msra.mxu0 0
    %721 = vmatprep.subr.bf16.mxu0 0
    %722 = vmatpush2.bf16.msra.mxu0 0
    %723 = vmatprep.subr.bf16.mxu0 0
    %724 = vmatpush2.bf16.msra.mxu0 0
    %725 = vmatprep.subr.bf16.mxu0 0
    %726 = vmatpush2.bf16.msra.mxu0 0
    %727 = vmatprep.mubr.bf16.mxu0 0
    %728 = vmatmul.mubr.bf16.gmra.mxu0 %v386
    %v729 = vpop.f32.mrf.mxu0
    %v730 = vadd.f32 0.0, %v729
    %v731 = vpop.f32.mrf.mxu0
    %v732 = vadd.f32 0.0, %v731
    %v733 = vpop.f32.mrf.mxu0
    %v734 = vadd.f32 0.0, %v733
    %v735 = vpop.f32.mrf.mxu0
    %v736 = vadd.f32 0.0, %v735
    %737 = vdwg.mxu0
    %738 = vmatprep.subr.bf16.mxu0 0
    %739 = vmatpush1.bf16.msra.mxu0 0
    %740 = vmatprep.subr.bf16.mxu0 0
    %741 = vmatpush1.bf16.msra.mxu0 0
    %742 = vmatprep.subr.bf16.mxu0 0
    %743 = vmatpush1.bf16.msra.mxu0 0
    %744 = vmatprep.subr.bf16.mxu0 0
    %745 = vmatpush1.bf16.msra.mxu0 0
    %746 = vmatprep.subr.bf16.mxu0 0
    %747 = vmatpush1.bf16.msra.mxu0 0
    %748 = vmatprep.subr.bf16.mxu0 %v435
    %749 = vmatpush1.bf16.msra.mxu0 %v432
    %750 = vmatprep.subr.bf16.mxu0 %v335
    %751 = vmatpush1.bf16.msra.mxu0 %v334
    %752 = vmatprep.subr.bf16.mxu0 %v319
    %753 = vmatpush1.bf16.msra.mxu0 %v318
    %754 = vmatprep.subr.bf16.mxu0 0
    %755 = vmatpush2.bf16.msra.mxu0 0
    %756 = vmatprep.subr.bf16.mxu0 0
    %757 = vmatpush2.bf16.msra.mxu0 0
    %758 = vmatprep.subr.bf16.mxu0 0
    %759 = vmatpush2.bf16.msra.mxu0 0
    %760 = vmatprep.subr.bf16.mxu0 0
    %761 = vmatpush2.bf16.msra.mxu0 0
    %762 = vmatprep.subr.bf16.mxu0 0
    %763 = vmatpush2.bf16.msra.mxu0 0
    %764 = vmatprep.subr.bf16.mxu0 0
    %765 = vmatpush2.bf16.msra.mxu0 0
    %766 = vmatprep.subr.bf16.mxu0 0
    %767 = vmatpush2.bf16.msra.mxu0 0
    %768 = vmatprep.subr.bf16.mxu0 0
    %769 = vmatpush2.bf16.msra.mxu0 0
    %770 = vmatprep.mubr.bf16.mxu0 0
    %771 = vmatmul.mubr.bf16.gmra.mxu0 %v386
    %v772 = vpop.f32.mrf.mxu0
    %v773 = vadd.f32 0.0, %v772
    %v774 = vpop.f32.mrf.mxu0
    %v775 = vadd.f32 0.0, %v774
    %v776 = vpop.f32.mrf.mxu0
    %v777 = vadd.f32 0.0, %v776
    %v778 = vpop.f32.mrf.mxu0
    %v779 = vadd.f32 0.0, %v778
    %780 = vdwg.mxu0
    %v781 = vmax.f32 %v472, %v644
    %v782 = vmax.f32 %v474, %v646
    %v783 = vmax.f32 %v515, %v687
    %v784 = vmax.f32 %v517, %v689
    %v785 = vmax.f32 %v558, %v730
    %v786 = vmax.f32 %v560, %v732
    %v787 = vmax.f32 %v601, %v773
    %v788 = vmax.f32 %v603, %v775
    %v789 = vmax.f32 %v476, %v648
    %v790 = vmax.f32 %v478, %v650
    %v791 = vmax.f32 %v519, %v691
    %v792 = vmax.f32 %v521, %v693
    %v793 = vmax.f32 %v562, %v734
    %v794 = vmax.f32 %v564, %v736
    %v795 = vmax.f32 %v605, %v777
    %v796 = vmax.f32 %v607, %v779
    %v797 = vld [vmem:[#allocation8] sm:$0xff]
    %v799 = vlaneseq
    %v800 = vshrl.u32 %v799, 7
    %v801 = vsub.s32 0, %v800
    %v802 = vrot.slane %v797, %v801
    %v803 = vlaneseq
    %v804 = vshrl.u32 %v803, 7
    %v805 = vsub.s32 1, %v804
    %v806 = vrot.slane %v797, %v805
    %v807 = vlaneseq
    %v808 = vshrl.u32 %v807, 7
    %v809 = vsub.s32 2, %v808
    %v810 = vrot.slane %v797, %v809
    %v811 = vlaneseq
    %v812 = vshrl.u32 %v811, 7
    %v813 = vsub.s32 3, %v812
    %v814 = vrot.slane %v797, %v813
    %v815 = vlaneseq
    %v816 = vshrl.u32 %v815, 7
    %v817 = vsub.s32 4, %v816
    %v818 = vrot.slane %v797, %v817
    %v819 = vlaneseq
    %v820 = vshrl.u32 %v819, 7
    %v821 = vsub.s32 5, %v820
    %v822 = vrot.slane %v797, %v821
    %v823 = vlaneseq
    %v824 = vshrl.u32 %v823, 7
    %v825 = vsub.s32 6, %v824
    %v826 = vrot.slane %v797, %v825
    %v827 = vlaneseq
    %v828 = vshrl.u32 %v827, 7
    %v829 = vsub.s32 7, %v828
    %v830 = vrot.slane %v797, %v829
    %v839 = vadd.f32 %v781, %v802
    %v840 = vadd.f32 %v782, %v806
    %v841 = vadd.f32 %v783, %v810
    %v842 = vadd.f32 %v784, %v814
    %v843 = vadd.f32 %v785, %v818
    %v844 = vadd.f32 %v786, %v822
    %v845 = vadd.f32 %v787, %v826
    %v846 = vadd.f32 %v788, %v830
    %v847 = vadd.f32 %v789, %v802
    %v848 = vadd.f32 %v790, %v806
    %v849 = vadd.f32 %v791, %v810
    %v850 = vadd.f32 %v792, %v814
    %v851 = vadd.f32 %v793, %v818
    %v852 = vadd.f32 %v794, %v822
    %v853 = vadd.f32 %v795, %v826
    %v854 = vadd.f32 %v796, %v830
    %v855 = vmax.f32 %v839, 0.0
    %v856 = vmax.f32 %v840, 0.0
    %v857 = vmax.f32 %v841, 0.0
    %v858 = vmax.f32 %v842, 0.0
    %v859 = vmax.f32 %v843, 0.0
    %v860 = vmax.f32 %v844, 0.0
    %v861 = vmax.f32 %v845, 0.0
    %v862 = vmax.f32 %v846, 0.0
    %v863 = vmax.f32 %v847, 0.0
    %v864 = vmax.f32 %v848, 0.0
    %v865 = vmax.f32 %v849, 0.0
    %v866 = vmax.f32 %v850, 0.0
    %v867 = vmax.f32 %v851, 0.0
    %v868 = vmax.f32 %v852, 0.0
    %v869 = vmax.f32 %v853, 0.0
    %v870 = vmax.f32 %v854, 0.0
    %v871 = vpack.c.bf16 %v863, %v855
    %v872 = vpack.c.bf16 %v864, %v856
    %v873 = vpack.c.bf16 %v865, %v857
    %v874 = vpack.c.bf16 %v866, %v858
    %v875 = vpack.c.bf16 %v867, %v859
    %v876 = vpack.c.bf16 %v868, %v860
    %v877 = vpack.c.bf16 %v869, %v861
    %v878 = vpack.c.bf16 %v870, %v862
    %v879 = vld [vmem:[#allocation9] sm:$0xff]
    %v880 = vld [vmem:[#allocation9 + $0x8] sm:$0xff]
    %v881 = vld [vmem:[#allocation9 + $0x10] sm:$0xff]
    %v882 = vld [vmem:[#allocation9 + $0x18] sm:$0xff]
    %v883 = vld [vmem:[#allocation9 + $0x20] sm:$0xff]
    %v884 = vld [vmem:[#allocation9 + $0x28] sm:$0xff]
    %v885 = vld [vmem:[#allocation9 + $0x30] sm:$0xff]
    %v886 = vld [vmem:[#allocation9 + $0x38] sm:$0xff]
    %v887 = vld [vmem:[#allocation9 + $0x40] sm:$0xff]
    %v888 = vld [vmem:[#allocation9 + $0x48] sm:$0xff]
    %v889 = vld [vmem:[#allocation9 + $0x50] sm:$0xff]
    %v890 = vld [vmem:[#allocation9 + $0x58] sm:$0xff]
    %v891 = vld [vmem:[#allocation9 + $0x60] sm:$0xff]
    %v892 = vld [vmem:[#allocation9 + $0x68] sm:$0xff]
    %v893 = vld [vmem:[#allocation9 + $0x70] sm:$0xff]
    %v894 = vld [vmem:[#allocation9 + $0x78] sm:$0xff]
    %v895 = vld [vmem:[#allocation9 + $0x80] sm:$0xff]
    %v896 = vld [vmem:[#allocation9 + $0x88] sm:$0xff]
    %v897 = vld [vmem:[#allocation9 + $0x90] sm:$0xff]
    %v898 = vld [vmem:[#allocation9 + $0x98] sm:$0xff]
    %v899 = vld [vmem:[#allocation9 + $0xa0] sm:$0xff]
    %v900 = vld [vmem:[#allocation9 + $0xa8] sm:$0xff]
    %v901 = vld [vmem:[#allocation9 + $0xb0] sm:$0xff]
    %v902 = vld [vmem:[#allocation9 + $0xb8] sm:$0xff]
    %v903 = vld [vmem:[#allocation9 + $0xc0] sm:$0xff]
    %v904 = vld [vmem:[#allocation9 + $0xc8] sm:$0xff]
    %v905 = vld [vmem:[#allocation9 + $0xd0] sm:$0xff]
    %v906 = vld [vmem:[#allocation9 + $0xd8] sm:$0xff]
    %v907 = vld [vmem:[#allocation9 + $0xe0] sm:$0xff]
    %v908 = vld [vmem:[#allocation9 + $0xe8] sm:$0xff]
    %v909 = vld [vmem:[#allocation9 + $0xf0] sm:$0xff]
    %v910 = vld [vmem:[#allocation9 + $0xf8] sm:$0xff]
    %v911 = vld [vmem:[#allocation9 + $0x100] sm:$0xff]
    %v912 = vld [vmem:[#allocation9 + $0x108] sm:$0xff]
    %v913 = vld [vmem:[#allocation9 + $0x110] sm:$0xff]
    %v914 = vld [vmem:[#allocation9 + $0x118] sm:$0xff]
    %v915 = vld [vmem:[#allocation9 + $0x120] sm:$0xff]
    %v916 = vld [vmem:[#allocation9 + $0x128] sm:$0xff]
    %v917 = vld [vmem:[#allocation9 + $0x130] sm:$0xff]
    %v918 = vld [vmem:[#allocation9 + $0x138] sm:$0xff]
    %v919 = vld [vmem:[#allocation9 + $0x140] sm:$0xff]
    %v920 = vld [vmem:[#allocation9 + $0x148] sm:$0xff]
    %v921 = vld [vmem:[#allocation9 + $0x150] sm:$0xff]
    %v922 = vld [vmem:[#allocation9 + $0x158] sm:$0xff]
    %v923 = vld [vmem:[#allocation9 + $0x160] sm:$0xff]
    %v924 = vld [vmem:[#allocation9 + $0x168] sm:$0xff]
    %v925 = vld [vmem:[#allocation9 + $0x170] sm:$0xff]
    %v926 = vld [vmem:[#allocation9 + $0x178] sm:$0xff]
    %v927 = vld [vmem:[#allocation9 + $0x180] sm:$0xff]
    %v928 = vld [vmem:[#allocation9 + $0x188] sm:$0xff]
    %v929 = vld [vmem:[#allocation9 + $0x190] sm:$0xff]
    %v930 = vld [vmem:[#allocation9 + $0x198] sm:$0xff]
    %v931 = vld [vmem:[#allocation9 + $0x1a0] sm:$0xff]
    %v932 = vld [vmem:[#allocation9 + $0x1a8] sm:$0xff]
    %v933 = vld [vmem:[#allocation9 + $0x1b0] sm:$0xff]
    %v934 = vld [vmem:[#allocation9 + $0x1b8] sm:$0xff]
    %v935 = vld [vmem:[#allocation9 + $0x1c0] sm:$0xff]
    %v936 = vld [vmem:[#allocation9 + $0x1c8] sm:$0xff]
    %v937 = vld [vmem:[#allocation9 + $0x1d0] sm:$0xff]
    %v938 = vld [vmem:[#allocation9 + $0x1d8] sm:$0xff]
    %v939 = vld [vmem:[#allocation9 + $0x1e0] sm:$0xff]
    %v940 = vld [vmem:[#allocation9 + $0x1e8] sm:$0xff]
    %v941 = vld [vmem:[#allocation9 + $0x1f0] sm:$0xff]
    %v942 = vld [vmem:[#allocation9 + $0x1f8] sm:$0xff]
    %v943 = vld [vmem:[#allocation9 + $0x200] sm:$0xff]
    %v944 = vld [vmem:[#allocation9 + $0x208] sm:$0xff]
    %v945 = vld [vmem:[#allocation9 + $0x210] sm:$0xff]
    %v946 = vld [vmem:[#allocation9 + $0x218] sm:$0xff]
    %v947 = vld [vmem:[#allocation9 + $0x220] sm:$0xff]
    %v948 = vld [vmem:[#allocation9 + $0x228] sm:$0xff]
    %v949 = vld [vmem:[#allocation9 + $0x230] sm:$0xff]
    %v950 = vld [vmem:[#allocation9 + $0x238] sm:$0xff]
    %v951 = vld [vmem:[#allocation9 + $0x240] sm:$0xff]
    %v952 = vld [vmem:[#allocation9 + $0x248] sm:$0xff]
    %v953 = vld [vmem:[#allocation9 + $0x250] sm:$0xff]
    %v954 = vld [vmem:[#allocation9 + $0x258] sm:$0xff]
    %v955 = vld [vmem:[#allocation9 + $0x260] sm:$0xff]
    %v956 = vld [vmem:[#allocation9 + $0x268] sm:$0xff]
    %v957 = vld [vmem:[#allocation9 + $0x270] sm:$0xff]
    %v958 = vld [vmem:[#allocation9 + $0x278] sm:$0xff]
    %v959 = vld [vmem:[#allocation9 + $0x280] sm:$0xff]
    %v960 = vld [vmem:[#allocation9 + $0x288] sm:$0xff]
    %v961 = vld [vmem:[#allocation9 + $0x290] sm:$0xff]
    %v962 = vld [vmem:[#allocation9 + $0x298] sm:$0xff]
    %v963 = vld [vmem:[#allocation9 + $0x2a0] sm:$0xff]
    %v964 = vld [vmem:[#allocation9 + $0x2a8] sm:$0xff]
    %v965 = vld [vmem:[#allocation9 + $0x2b0] sm:$0xff]
    %v966 = vld [vmem:[#allocation9 + $0x2b8] sm:$0xff]
    %v967 = vld [vmem:[#allocation9 + $0x2c0] sm:$0xff]
    %v968 = vld [vmem:[#allocation9 + $0x2c8] sm:$0xff]
    %v969 = vld [vmem:[#allocation9 + $0x2d0] sm:$0xff]
    %v970 = vld [vmem:[#allocation9 + $0x2d8] sm:$0xff]
    %v971 = vld [vmem:[#allocation9 + $0x2e0] sm:$0xff]
    %v972 = vld [vmem:[#allocation9 + $0x2e8] sm:$0xff]
    %v973 = vld [vmem:[#allocation9 + $0x2f0] sm:$0xff]
    %v974 = vld [vmem:[#allocation9 + $0x2f8] sm:$0xff]
    %v975 = vld [vmem:[#allocation9 + $0x300] sm:$0xff]
    %v976 = vld [vmem:[#allocation9 + $0x308] sm:$0xff]
    %v977 = vld [vmem:[#allocation9 + $0x310] sm:$0xff]
    %v978 = vld [vmem:[#allocation9 + $0x318] sm:$0xff]
    %v979 = vld [vmem:[#allocation9 + $0x320] sm:$0xff]
    %v980 = vld [vmem:[#allocation9 + $0x328] sm:$0xff]
    %v981 = vld [vmem:[#allocation9 + $0x330] sm:$0xff]
    %v982 = vld [vmem:[#allocation9 + $0x338] sm:$0xff]
    %v983 = vld [vmem:[#allocation9 + $0x340] sm:$0xff]
    %v984 = vld [vmem:[#allocation9 + $0x348] sm:$0xff]
    %v985 = vld [vmem:[#allocation9 + $0x350] sm:$0xff]
    %v986 = vld [vmem:[#allocation9 + $0x358] sm:$0xff]
    %v987 = vld [vmem:[#allocation9 + $0x360] sm:$0xff]
    %v988 = vld [vmem:[#allocation9 + $0x368] sm:$0xff]
    %v989 = vld [vmem:[#allocation9 + $0x370] sm:$0xff]
    %v990 = vld [vmem:[#allocation9 + $0x378] sm:$0xff]
    %v991 = vld [vmem:[#allocation9 + $0x380] sm:$0xff]
    %v992 = vld [vmem:[#allocation9 + $0x388] sm:$0xff]
    %v993 = vld [vmem:[#allocation9 + $0x390] sm:$0xff]
    %v994 = vld [vmem:[#allocation9 + $0x398] sm:$0xff]
    %v995 = vld [vmem:[#allocation9 + $0x3a0] sm:$0xff]
    %v996 = vld [vmem:[#allocation9 + $0x3a8] sm:$0xff]
    %v997 = vld [vmem:[#allocation9 + $0x3b0] sm:$0xff]
    %v998 = vld [vmem:[#allocation9 + $0x3b8] sm:$0xff]
    %v999 = vld [vmem:[#allocation9 + $0x3c0] sm:$0xff]
    %v1000 = vld [vmem:[#allocation9 + $0x3c8] sm:$0xff]
    %v1001 = vld [vmem:[#allocation9 + $0x3d0] sm:$0xff]
    %v1002 = vld [vmem:[#allocation9 + $0x3d8] sm:$0xff]
    %v1003 = vld [vmem:[#allocation9 + $0x3e0] sm:$0xff]
    %v1004 = vld [vmem:[#allocation9 + $0x3e8] sm:$0xff]
    %v1005 = vld [vmem:[#allocation9 + $0x3f0] sm:$0xff]
    %v1006 = vld [vmem:[#allocation9 + $0x3f8] sm:$0xff]
    %v1007 = vld [vmem:[#allocation11] sm:$0x3]
    %v1009 = vlaneseq
    %v1010 = vshrl.u32 %v1009, 7
    %v1011 = vsub.s32 0, %v1010
    %v1012 = vrot.slane %v1007, %v1011
    %v1013 = vlaneseq
    %v1014 = vshrl.u32 %v1013, 7
    %v1015 = vsub.s32 1, %v1014
    %v1016 = vrot.slane %v1007, %v1015
    %v1147 = vunpack.c.l.b16 %v879
    %v1148 = vunpack.c.h.b16 %v879
    %v1149 = vunpack.c.l.b16 %v880
    %v1150 = vunpack.c.h.b16 %v880
    %v1151 = vunpack.c.l.b16 %v881
    %v1152 = vunpack.c.h.b16 %v881
    %v1153 = vunpack.c.l.b16 %v882
    %v1154 = vunpack.c.h.b16 %v882
    %v1155 = vunpack.c.l.b16 %v883
    %v1156 = vunpack.c.h.b16 %v883
    %v1157 = vunpack.c.l.b16 %v884
    %v1158 = vunpack.c.h.b16 %v884
    %v1159 = vunpack.c.l.b16 %v885
    %v1160 = vunpack.c.h.b16 %v885
    %v1161 = vunpack.c.l.b16 %v886
    %v1162 = vunpack.c.h.b16 %v886
    %v1163 = vunpack.c.l.b16 %v887
    %v1164 = vunpack.c.h.b16 %v887
    %v1165 = vunpack.c.l.b16 %v888
    %v1166 = vunpack.c.h.b16 %v888
    %v1167 = vunpack.c.l.b16 %v889
    %v1168 = vunpack.c.h.b16 %v889
    %v1169 = vunpack.c.l.b16 %v890
    %v1170 = vunpack.c.h.b16 %v890
    %v1171 = vunpack.c.l.b16 %v891
    %v1172 = vunpack.c.h.b16 %v891
    %v1173 = vunpack.c.l.b16 %v892
    %v1174 = vunpack.c.h.b16 %v892
    %v1175 = vunpack.c.l.b16 %v893
    %v1176 = vunpack.c.h.b16 %v893
    %v1177 = vunpack.c.l.b16 %v894
    %v1178 = vunpack.c.h.b16 %v894
    %v1179 = vunpack.c.l.b16 %v895
    %v1180 = vunpack.c.h.b16 %v895
    %v1181 = vunpack.c.l.b16 %v896
    %v1182 = vunpack.c.h.b16 %v896
    %v1183 = vunpack.c.l.b16 %v897
    %v1184 = vunpack.c.h.b16 %v897
    %v1185 = vunpack.c.l.b16 %v898
    %v1186 = vunpack.c.h.b16 %v898
    %v1187 = vunpack.c.l.b16 %v899
    %v1188 = vunpack.c.h.b16 %v899
    %v1189 = vunpack.c.l.b16 %v900
    %v1190 = vunpack.c.h.b16 %v900
    %v1191 = vunpack.c.l.b16 %v901
    %v1192 = vunpack.c.h.b16 %v901
    %v1193 = vunpack.c.l.b16 %v902
    %v1194 = vunpack.c.h.b16 %v902
    %v1195 = vunpack.c.l.b16 %v903
    %v1196 = vunpack.c.h.b16 %v903
    %v1197 = vunpack.c.l.b16 %v904
    %v1198 = vunpack.c.h.b16 %v904
    %v1199 = vunpack.c.l.b16 %v905
    %v1200 = vunpack.c.h.b16 %v905
    %v1201 = vunpack.c.l.b16 %v906
    %v1202 = vunpack.c.h.b16 %v906
    %v1203 = vunpack.c.l.b16 %v907
    %v1204 = vunpack.c.h.b16 %v907
    %v1205 = vunpack.c.l.b16 %v908
    %v1206 = vunpack.c.h.b16 %v908
    %v1207 = vunpack.c.l.b16 %v909
    %v1208 = vunpack.c.h.b16 %v909
    %v1209 = vunpack.c.l.b16 %v910
    %v1210 = vunpack.c.h.b16 %v910
    %v1211 = vunpack.c.l.b16 %v911
    %v1212 = vunpack.c.h.b16 %v911
    %v1213 = vunpack.c.l.b16 %v912
    %v1214 = vunpack.c.h.b16 %v912
    %v1215 = vunpack.c.l.b16 %v913
    %v1216 = vunpack.c.h.b16 %v913
    %v1217 = vunpack.c.l.b16 %v914
    %v1218 = vunpack.c.h.b16 %v914
    %v1219 = vunpack.c.l.b16 %v915
    %v1220 = vunpack.c.h.b16 %v915
    %v1221 = vunpack.c.l.b16 %v916
    %v1222 = vunpack.c.h.b16 %v916
    %v1223 = vunpack.c.l.b16 %v917
    %v1224 = vunpack.c.h.b16 %v917
    %v1225 = vunpack.c.l.b16 %v918
    %v1226 = vunpack.c.h.b16 %v918
    %v1227 = vunpack.c.l.b16 %v919
    %v1228 = vunpack.c.h.b16 %v919
    %v1229 = vunpack.c.l.b16 %v920
    %v1230 = vunpack.c.h.b16 %v920
    %v1231 = vunpack.c.l.b16 %v921
    %v1232 = vunpack.c.h.b16 %v921
    %v1233 = vunpack.c.l.b16 %v922
    %v1234 = vunpack.c.h.b16 %v922
    %v1235 = vunpack.c.l.b16 %v923
    %v1236 = vunpack.c.h.b16 %v923
    %v1237 = vunpack.c.l.b16 %v924
    %v1238 = vunpack.c.h.b16 %v924
    %v1239 = vunpack.c.l.b16 %v925
    %v1240 = vunpack.c.h.b16 %v925
    %v1241 = vunpack.c.l.b16 %v926
    %v1242 = vunpack.c.h.b16 %v926
    %v1243 = vunpack.c.l.b16 %v927
    %v1244 = vunpack.c.h.b16 %v927
    %v1245 = vunpack.c.l.b16 %v928
    %v1246 = vunpack.c.h.b16 %v928
    %v1247 = vunpack.c.l.b16 %v929
    %v1248 = vunpack.c.h.b16 %v929
    %v1249 = vunpack.c.l.b16 %v930
    %v1250 = vunpack.c.h.b16 %v930
    %v1251 = vunpack.c.l.b16 %v931
    %v1252 = vunpack.c.h.b16 %v931
    %v1253 = vunpack.c.l.b16 %v932
    %v1254 = vunpack.c.h.b16 %v932
    %v1255 = vunpack.c.l.b16 %v933
    %v1256 = vunpack.c.h.b16 %v933
    %v1257 = vunpack.c.l.b16 %v934
    %v1258 = vunpack.c.h.b16 %v934
    %v1259 = vunpack.c.l.b16 %v935
    %v1260 = vunpack.c.h.b16 %v935
    %v1261 = vunpack.c.l.b16 %v936
    %v1262 = vunpack.c.h.b16 %v936
    %v1263 = vunpack.c.l.b16 %v937
    %v1264 = vunpack.c.h.b16 %v937
    %v1265 = vunpack.c.l.b16 %v938
    %v1266 = vunpack.c.h.b16 %v938
    %v1267 = vunpack.c.l.b16 %v939
    %v1268 = vunpack.c.h.b16 %v939
    %v1269 = vunpack.c.l.b16 %v940
    %v1270 = vunpack.c.h.b16 %v940
    %v1271 = vunpack.c.l.b16 %v941
    %v1272 = vunpack.c.h.b16 %v941
    %v1273 = vunpack.c.l.b16 %v942
    %v1274 = vunpack.c.h.b16 %v942
    %v1275 = vunpack.c.l.b16 %v943
    %v1276 = vunpack.c.h.b16 %v943
    %v1277 = vunpack.c.l.b16 %v944
    %v1278 = vunpack.c.h.b16 %v944
    %v1279 = vunpack.c.l.b16 %v945
    %v1280 = vunpack.c.h.b16 %v945
    %v1281 = vunpack.c.l.b16 %v946
    %v1282 = vunpack.c.h.b16 %v946
    %v1283 = vunpack.c.l.b16 %v947
    %v1284 = vunpack.c.h.b16 %v947
    %v1285 = vunpack.c.l.b16 %v948
    %v1286 = vunpack.c.h.b16 %v948
    %v1287 = vunpack.c.l.b16 %v949
    %v1288 = vunpack.c.h.b16 %v949
    %v1289 = vunpack.c.l.b16 %v950
    %v1290 = vunpack.c.h.b16 %v950
    %v1291 = vunpack.c.l.b16 %v951
    %v1292 = vunpack.c.h.b16 %v951
    %v1293 = vunpack.c.l.b16 %v952
    %v1294 = vunpack.c.h.b16 %v952
    %v1295 = vunpack.c.l.b16 %v953
    %v1296 = vunpack.c.h.b16 %v953
    %v1297 = vunpack.c.l.b16 %v954
    %v1298 = vunpack.c.h.b16 %v954
    %v1299 = vunpack.c.l.b16 %v955
    %v1300 = vunpack.c.h.b16 %v955
    %v1301 = vunpack.c.l.b16 %v956
    %v1302 = vunpack.c.h.b16 %v956
    %v1303 = vunpack.c.l.b16 %v957
    %v1304 = vunpack.c.h.b16 %v957
    %v1305 = vunpack.c.l.b16 %v958
    %v1306 = vunpack.c.h.b16 %v958
    %v1307 = vunpack.c.l.b16 %v959
    %v1308 = vunpack.c.h.b16 %v959
    %v1309 = vunpack.c.l.b16 %v960
    %v1310 = vunpack.c.h.b16 %v960
    %v1311 = vunpack.c.l.b16 %v961
    %v1312 = vunpack.c.h.b16 %v961
    %v1313 = vunpack.c.l.b16 %v962
    %v1314 = vunpack.c.h.b16 %v962
    %v1315 = vunpack.c.l.b16 %v963
    %v1316 = vunpack.c.h.b16 %v963
    %v1317 = vunpack.c.l.b16 %v964
    %v1318 = vunpack.c.h.b16 %v964
    %v1319 = vunpack.c.l.b16 %v965
    %v1320 = vunpack.c.h.b16 %v965
    %v1321 = vunpack.c.l.b16 %v966
    %v1322 = vunpack.c.h.b16 %v966
    %v1323 = vunpack.c.l.b16 %v967
    %v1324 = vunpack.c.h.b16 %v967
    %v1325 = vunpack.c.l.b16 %v968
    %v1326 = vunpack.c.h.b16 %v968
    %v1327 = vunpack.c.l.b16 %v969
    %v1328 = vunpack.c.h.b16 %v969
    %v1329 = vunpack.c.l.b16 %v970
    %v1330 = vunpack.c.h.b16 %v970
    %v1331 = vunpack.c.l.b16 %v971
    %v1332 = vunpack.c.h.b16 %v971
    %v1333 = vunpack.c.l.b16 %v972
    %v1334 = vunpack.c.h.b16 %v972
    %v1335 = vunpack.c.l.b16 %v973
    %v1336 = vunpack.c.h.b16 %v973
    %v1337 = vunpack.c.l.b16 %v974
    %v1338 = vunpack.c.h.b16 %v974
    %v1339 = vunpack.c.l.b16 %v975
    %v1340 = vunpack.c.h.b16 %v975
    %v1341 = vunpack.c.l.b16 %v976
    %v1342 = vunpack.c.h.b16 %v976
    %v1343 = vunpack.c.l.b16 %v977
    %v1344 = vunpack.c.h.b16 %v977
    %v1345 = vunpack.c.l.b16 %v978
    %v1346 = vunpack.c.h.b16 %v978
    %v1347 = vunpack.c.l.b16 %v979
    %v1348 = vunpack.c.h.b16 %v979
    %v1349 = vunpack.c.l.b16 %v980
    %v1350 = vunpack.c.h.b16 %v980
    %v1351 = vunpack.c.l.b16 %v981
    %v1352 = vunpack.c.h.b16 %v981
    %v1353 = vunpack.c.l.b16 %v982
    %v1354 = vunpack.c.h.b16 %v982
    %v1355 = vunpack.c.l.b16 %v983
    %v1356 = vunpack.c.h.b16 %v983
    %v1357 = vunpack.c.l.b16 %v984
    %v1358 = vunpack.c.h.b16 %v984
    %v1359 = vunpack.c.l.b16 %v985
    %v1360 = vunpack.c.h.b16 %v985
    %v1361 = vunpack.c.l.b16 %v986
    %v1362 = vunpack.c.h.b16 %v986
    %v1363 = vunpack.c.l.b16 %v987
    %v1364 = vunpack.c.h.b16 %v987
    %v1365 = vunpack.c.l.b16 %v988
    %v1366 = vunpack.c.h.b16 %v988
    %v1367 = vunpack.c.l.b16 %v989
    %v1368 = vunpack.c.h.b16 %v989
    %v1369 = vunpack.c.l.b16 %v990
    %v1370 = vunpack.c.h.b16 %v990
    %v1371 = vunpack.c.l.b16 %v991
    %v1372 = vunpack.c.h.b16 %v991
    %v1373 = vunpack.c.l.b16 %v992
    %v1374 = vunpack.c.h.b16 %v992
    %v1375 = vunpack.c.l.b16 %v993
    %v1376 = vunpack.c.h.b16 %v993
    %v1377 = vunpack.c.l.b16 %v994
    %v1378 = vunpack.c.h.b16 %v994
    %v1379 = vunpack.c.l.b16 %v995
    %v1380 = vunpack.c.h.b16 %v995
    %v1381 = vunpack.c.l.b16 %v996
    %v1382 = vunpack.c.h.b16 %v996
    %v1383 = vunpack.c.l.b16 %v997
    %v1384 = vunpack.c.h.b16 %v997
    %v1385 = vunpack.c.l.b16 %v998
    %v1386 = vunpack.c.h.b16 %v998
    %v1387 = vunpack.c.l.b16 %v999
    %v1388 = vunpack.c.h.b16 %v999
    %v1389 = vunpack.c.l.b16 %v1000
    %v1390 = vunpack.c.h.b16 %v1000
    %v1391 = vunpack.c.l.b16 %v1001
    %v1392 = vunpack.c.h.b16 %v1001
    %v1393 = vunpack.c.l.b16 %v1002
    %v1394 = vunpack.c.h.b16 %v1002
    %v1395 = vunpack.c.l.b16 %v1003
    %v1396 = vunpack.c.h.b16 %v1003
    %v1397 = vunpack.c.l.b16 %v1004
    %v1398 = vunpack.c.h.b16 %v1004
    %v1399 = vunpack.c.l.b16 %v1005
    %v1400 = vunpack.c.h.b16 %v1005
    %v1401 = vunpack.c.l.b16 %v1006
    %v1402 = vunpack.c.h.b16 %v1006
    %v1403 = vpack.c.b16 %v1149, %v1147
    %v1404 = vpack.c.b16 %v1150, %v1148
    %v1405 = vpack.c.b16 %v1153, %v1151
    %v1406 = vpack.c.b16 %v1154, %v1152
    %v1407 = vpack.c.b16 %v1157, %v1155
    %v1408 = vpack.c.b16 %v1158, %v1156
    %v1409 = vpack.c.b16 %v1161, %v1159
    %v1410 = vpack.c.b16 %v1162, %v1160
    %v1411 = vpack.c.b16 %v1165, %v1163
    %v1412 = vpack.c.b16 %v1166, %v1164
    %v1413 = vpack.c.b16 %v1169, %v1167
    %v1414 = vpack.c.b16 %v1170, %v1168
    %v1415 = vpack.c.b16 %v1173, %v1171
    %v1416 = vpack.c.b16 %v1174, %v1172
    %v1417 = vpack.c.b16 %v1177, %v1175
    %v1418 = vpack.c.b16 %v1178, %v1176
    %v1419 = vpack.c.b16 %v1181, %v1179
    %v1420 = vpack.c.b16 %v1182, %v1180
    %v1421 = vpack.c.b16 %v1185, %v1183
    %v1422 = vpack.c.b16 %v1186, %v1184
    %v1423 = vpack.c.b16 %v1189, %v1187
    %v1424 = vpack.c.b16 %v1190, %v1188
    %v1425 = vpack.c.b16 %v1193, %v1191
    %v1426 = vpack.c.b16 %v1194, %v1192
    %v1427 = vpack.c.b16 %v1197, %v1195
    %v1428 = vpack.c.b16 %v1198, %v1196
    %v1429 = vpack.c.b16 %v1201, %v1199
    %v1430 = vpack.c.b16 %v1202, %v1200
    %v1431 = vpack.c.b16 %v1205, %v1203
    %v1432 = vpack.c.b16 %v1206, %v1204
    %v1433 = vpack.c.b16 %v1209, %v1207
    %v1434 = vpack.c.b16 %v1210, %v1208
    %v1435 = vpack.c.b16 %v1213, %v1211
    %v1436 = vpack.c.b16 %v1214, %v1212
    %v1437 = vpack.c.b16 %v1217, %v1215
    %v1438 = vpack.c.b16 %v1218, %v1216
    %v1439 = vpack.c.b16 %v1221, %v1219
    %v1440 = vpack.c.b16 %v1222, %v1220
    %v1441 = vpack.c.b16 %v1225, %v1223
    %v1442 = vpack.c.b16 %v1226, %v1224
    %v1443 = vpack.c.b16 %v1229, %v1227
    %v1444 = vpack.c.b16 %v1230, %v1228
    %v1445 = vpack.c.b16 %v1233, %v1231
    %v1446 = vpack.c.b16 %v1234, %v1232
    %v1447 = vpack.c.b16 %v1237, %v1235
    %v1448 = vpack.c.b16 %v1238, %v1236
    %v1449 = vpack.c.b16 %v1241, %v1239
    %v1450 = vpack.c.b16 %v1242, %v1240
    %v1451 = vpack.c.b16 %v1245, %v1243
    %v1452 = vpack.c.b16 %v1246, %v1244
    %v1453 = vpack.c.b16 %v1249, %v1247
    %v1454 = vpack.c.b16 %v1250, %v1248
    %v1455 = vpack.c.b16 %v1253, %v1251
    %v1456 = vpack.c.b16 %v1254, %v1252
    %v1457 = vpack.c.b16 %v1257, %v1255
    %v1458 = vpack.c.b16 %v1258, %v1256
    %v1459 = vpack.c.b16 %v1261, %v1259
    %v1460 = vpack.c.b16 %v1262, %v1260
    %v1461 = vpack.c.b16 %v1265, %v1263
    %v1462 = vpack.c.b16 %v1266, %v1264
    %v1463 = vpack.c.b16 %v1269, %v1267
    %v1464 = vpack.c.b16 %v1270, %v1268
    %v1465 = vpack.c.b16 %v1273, %v1271
    %v1466 = vpack.c.b16 %v1274, %v1272
    %v1467 = vpack.c.b16 %v1277, %v1275
    %v1468 = vpack.c.b16 %v1278, %v1276
    %v1469 = vpack.c.b16 %v1281, %v1279
    %v1470 = vpack.c.b16 %v1282, %v1280
    %v1471 = vpack.c.b16 %v1285, %v1283
    %v1472 = vpack.c.b16 %v1286, %v1284
    %v1473 = vpack.c.b16 %v1289, %v1287
    %v1474 = vpack.c.b16 %v1290, %v1288
    %v1475 = vpack.c.b16 %v1293, %v1291
    %v1476 = vpack.c.b16 %v1294, %v1292
    %v1477 = vpack.c.b16 %v1297, %v1295
    %v1478 = vpack.c.b16 %v1298, %v1296
    %v1479 = vpack.c.b16 %v1301, %v1299
    %v1480 = vpack.c.b16 %v1302, %v1300
    %v1481 = vpack.c.b16 %v1305, %v1303
    %v1482 = vpack.c.b16 %v1306, %v1304
    %v1483 = vpack.c.b16 %v1309, %v1307
    %v1484 = vpack.c.b16 %v1310, %v1308
    %v1485 = vpack.c.b16 %v1313, %v1311
    %v1486 = vpack.c.b16 %v1314, %v1312
    %v1487 = vpack.c.b16 %v1317, %v1315
    %v1488 = vpack.c.b16 %v1318, %v1316
    %v1489 = vpack.c.b16 %v1321, %v1319
    %v1490 = vpack.c.b16 %v1322, %v1320
    %v1491 = vpack.c.b16 %v1325, %v1323
    %v1492 = vpack.c.b16 %v1326, %v1324
    %v1493 = vpack.c.b16 %v1329, %v1327
    %v1494 = vpack.c.b16 %v1330, %v1328
    %v1495 = vpack.c.b16 %v1333, %v1331
    %v1496 = vpack.c.b16 %v1334, %v1332
    %v1497 = vpack.c.b16 %v1337, %v1335
    %v1498 = vpack.c.b16 %v1338, %v1336
    %v1499 = vpack.c.b16 %v1341, %v1339
    %v1500 = vpack.c.b16 %v1342, %v1340
    %v1501 = vpack.c.b16 %v1345, %v1343
    %v1502 = vpack.c.b16 %v1346, %v1344
    %v1503 = vpack.c.b16 %v1349, %v1347
    %v1504 = vpack.c.b16 %v1350, %v1348
    %v1505 = vpack.c.b16 %v1353, %v1351
    %v1506 = vpack.c.b16 %v1354, %v1352
    %v1507 = vpack.c.b16 %v1357, %v1355
    %v1508 = vpack.c.b16 %v1358, %v1356
    %v1509 = vpack.c.b16 %v1361, %v1359
    %v1510 = vpack.c.b16 %v1362, %v1360
    %v1511 = vpack.c.b16 %v1365, %v1363
    %v1512 = vpack.c.b16 %v1366, %v1364
    %v1513 = vpack.c.b16 %v1369, %v1367
    %v1514 = vpack.c.b16 %v1370, %v1368
    %v1515 = vpack.c.b16 %v1373, %v1371
    %v1516 = vpack.c.b16 %v1374, %v1372
    %v1517 = vpack.c.b16 %v1377, %v1375
    %v1518 = vpack.c.b16 %v1378, %v1376
    %v1519 = vpack.c.b16 %v1381, %v1379
    %v1520 = vpack.c.b16 %v1382, %v1380
    %v1521 = vpack.c.b16 %v1385, %v1383
    %v1522 = vpack.c.b16 %v1386, %v1384
    %v1523 = vpack.c.b16 %v1389, %v1387
    %v1524 = vpack.c.b16 %v1390, %v1388
    %v1525 = vpack.c.b16 %v1393, %v1391
    %v1526 = vpack.c.b16 %v1394, %v1392
    %v1527 = vpack.c.b16 %v1397, %v1395
    %v1528 = vpack.c.b16 %v1398, %v1396
    %v1529 = vpack.c.b16 %v1401, %v1399
    %v1530 = vpack.c.b16 %v1402, %v1400
    %1659 = vmatprep.subr.bf16.mxu0 %v1418
    %1660 = vmatpush1.bf16.msra.mxu0 %v1417
    %1661 = vmatprep.subr.bf16.mxu0 %v1416
    %1662 = vmatpush1.bf16.msra.mxu0 %v1415
    %1663 = vmatprep.subr.bf16.mxu0 %v1414
    %1664 = vmatpush1.bf16.msra.mxu0 %v1413
    %1665 = vmatprep.subr.bf16.mxu0 %v1412
    %1666 = vmatpush1.bf16.msra.mxu0 %v1411
    %1667 = vmatprep.subr.bf16.mxu0 %v1410
    %1668 = vmatpush1.bf16.msra.mxu0 %v1409
    %1669 = vmatprep.subr.bf16.mxu0 %v1408
    %1670 = vmatpush1.bf16.msra.mxu0 %v1407
    %1671 = vmatprep.subr.bf16.mxu0 %v1406
    %1672 = vmatpush1.bf16.msra.mxu0 %v1405
    %1673 = vmatprep.subr.bf16.mxu0 %v1404
    %1674 = vmatpush1.bf16.msra.mxu0 %v1403
    %1675 = vmatprep.subr.bf16.mxu0 %v1434
    %1676 = vmatpush2.bf16.msra.mxu0 %v1433
    %1677 = vmatprep.subr.bf16.mxu0 %v1432
    %1678 = vmatpush2.bf16.msra.mxu0 %v1431
    %1679 = vmatprep.subr.bf16.mxu0 %v1430
    %1680 = vmatpush2.bf16.msra.mxu0 %v1429
    %1681 = vmatprep.subr.bf16.mxu0 %v1428
    %1682 = vmatpush2.bf16.msra.mxu0 %v1427
    %1683 = vmatprep.subr.bf16.mxu0 %v1426
    %1684 = vmatpush2.bf16.msra.mxu0 %v1425
    %1685 = vmatprep.subr.bf16.mxu0 %v1424
    %1686 = vmatpush2.bf16.msra.mxu0 %v1423
    %1687 = vmatprep.subr.bf16.mxu0 %v1422
    %1688 = vmatpush2.bf16.msra.mxu0 %v1421
    %1689 = vmatprep.subr.bf16.mxu0 %v1420
    %1690 = vmatpush2.bf16.msra.mxu0 %v1419
    %1691 = vmatprep.mubr.bf16.mxu0 %v872
    %1692 = vmatmul.mubr.bf16.gmra.mxu0 %v871
    %v1693 = vpop.f32.mrf.mxu0
    %v1694 = vadd.f32 %v1012, %v1693
    %v1695 = vpop.f32.mrf.mxu0
    %v1696 = vadd.f32 %v1016, %v1695
    %v1697 = vpop.f32.mrf.mxu0
    %v1698 = vadd.f32 %v1012, %v1697
    %v1699 = vpop.f32.mrf.mxu0
    %v1700 = vadd.f32 %v1016, %v1699
    %1701 = vdwg.mxu0
    %1702 = vmatprep.subr.bf16.mxu0 %v1450
    %1703 = vmatpush1.bf16.msra.mxu0 %v1449
    %1704 = vmatprep.subr.bf16.mxu0 %v1448
    %1705 = vmatpush1.bf16.msra.mxu0 %v1447
    %1706 = vmatprep.subr.bf16.mxu0 %v1446
    %1707 = vmatpush1.bf16.msra.mxu0 %v1445
    %1708 = vmatprep.subr.bf16.mxu0 %v1444
    %1709 = vmatpush1.bf16.msra.mxu0 %v1443
    %1710 = vmatprep.subr.bf16.mxu0 %v1442
    %1711 = vmatpush1.bf16.msra.mxu0 %v1441
    %1712 = vmatprep.subr.bf16.mxu0 %v1440
    %1713 = vmatpush1.bf16.msra.mxu0 %v1439
    %1714 = vmatprep.subr.bf16.mxu0 %v1438
    %1715 = vmatpush1.bf16.msra.mxu0 %v1437
    %1716 = vmatprep.subr.bf16.mxu0 %v1436
    %1717 = vmatpush1.bf16.msra.mxu0 %v1435
    %1718 = vmatprep.subr.bf16.mxu0 %v1466
    %1719 = vmatpush2.bf16.msra.mxu0 %v1465
    %1720 = vmatprep.subr.bf16.mxu0 %v1464
    %1721 = vmatpush2.bf16.msra.mxu0 %v1463
    %1722 = vmatprep.subr.bf16.mxu0 %v1462
    %1723 = vmatpush2.bf16.msra.mxu0 %v1461
    %1724 = vmatprep.subr.bf16.mxu0 %v1460
    %1725 = vmatpush2.bf16.msra.mxu0 %v1459
    %1726 = vmatprep.subr.bf16.mxu0 %v1458
    %1727 = vmatpush2.bf16.msra.mxu0 %v1457
    %1728 = vmatprep.subr.bf16.mxu0 %v1456
    %1729 = vmatpush2.bf16.msra.mxu0 %v1455
    %1730 = vmatprep.subr.bf16.mxu0 %v1454
    %1731 = vmatpush2.bf16.msra.mxu0 %v1453
    %1732 = vmatprep.subr.bf16.mxu0 %v1452
    %1733 = vmatpush2.bf16.msra.mxu0 %v1451
    %1734 = vmatprep.mubr.bf16.mxu0 %v874
    %1735 = vmatmul.mubr.bf16.gmra.mxu0 %v873
    %v1736 = vpop.f32.mrf.mxu0
    %v1737 = vadd.f32 %v1694, %v1736
    %v1738 = vpop.f32.mrf.mxu0
    %v1739 = vadd.f32 %v1696, %v1738
    %v1740 = vpop.f32.mrf.mxu0
    %v1741 = vadd.f32 %v1698, %v1740
    %v1742 = vpop.f32.mrf.mxu0
    %v1743 = vadd.f32 %v1700, %v1742
    %1744 = vdwg.mxu0
    %1745 = vmatprep.subr.bf16.mxu0 %v1482
    %1746 = vmatpush1.bf16.msra.mxu0 %v1481
    %1747 = vmatprep.subr.bf16.mxu0 %v1480
    %1748 = vmatpush1.bf16.msra.mxu0 %v1479
    %1749 = vmatprep.subr.bf16.mxu0 %v1478
    %1750 = vmatpush1.bf16.msra.mxu0 %v1477
    %1751 = vmatprep.subr.bf16.mxu0 %v1476
    %1752 = vmatpush1.bf16.msra.mxu0 %v1475
    %1753 = vmatprep.subr.bf16.mxu0 %v1474
    %1754 = vmatpush1.bf16.msra.mxu0 %v1473
    %1755 = vmatprep.subr.bf16.mxu0 %v1472
    %1756 = vmatpush1.bf16.msra.mxu0 %v1471
    %1757 = vmatprep.subr.bf16.mxu0 %v1470
    %1758 = vmatpush1.bf16.msra.mxu0 %v1469
    %1759 = vmatprep.subr.bf16.mxu0 %v1468
    %1760 = vmatpush1.bf16.msra.mxu0 %v1467
    %1761 = vmatprep.subr.bf16.mxu0 %v1498
    %1762 = vmatpush2.bf16.msra.mxu0 %v1497
    %1763 = vmatprep.subr.bf16.mxu0 %v1496
    %1764 = vmatpush2.bf16.msra.mxu0 %v1495
    %1765 = vmatprep.subr.bf16.mxu0 %v1494
    %1766 = vmatpush2.bf16.msra.mxu0 %v1493
    %1767 = vmatprep.subr.bf16.mxu0 %v1492
    %1768 = vmatpush2.bf16.msra.mxu0 %v1491
    %1769 = vmatprep.subr.bf16.mxu0 %v1490
    %1770 = vmatpush2.bf16.msra.mxu0 %v1489
    %1771 = vmatprep.subr.bf16.mxu0 %v1488
    %1772 = vmatpush2.bf16.msra.mxu0 %v1487
    %1773 = vmatprep.subr.bf16.mxu0 %v1486
    %1774 = vmatpush2.bf16.msra.mxu0 %v1485
    %1775 = vmatprep.subr.bf16.mxu0 %v1484
    %1776 = vmatpush2.bf16.msra.mxu0 %v1483
    %1777 = vmatprep.mubr.bf16.mxu0 %v876
    %1778 = vmatmul.mubr.bf16.gmra.mxu0 %v875
    %v1779 = vpop.f32.mrf.mxu0
    %v1780 = vadd.f32 %v1737, %v1779
    %v1781 = vpop.f32.mrf.mxu0
    %v1782 = vadd.f32 %v1739, %v1781
    %v1783 = vpop.f32.mrf.mxu0
    %v1784 = vadd.f32 %v1741, %v1783
    %v1785 = vpop.f32.mrf.mxu0
    %v1786 = vadd.f32 %v1743, %v1785
    %1787 = vdwg.mxu0
    %1788 = vmatprep.subr.bf16.mxu0 %v1514
    %1789 = vmatpush1.bf16.msra.mxu0 %v1513
    %1790 = vmatprep.subr.bf16.mxu0 %v1512
    %1791 = vmatpush1.bf16.msra.mxu0 %v1511
    %1792 = vmatprep.subr.bf16.mxu0 %v1510
    %1793 = vmatpush1.bf16.msra.mxu0 %v1509
    %1794 = vmatprep.subr.bf16.mxu0 %v1508
    %1795 = vmatpush1.bf16.msra.mxu0 %v1507
    %1796 = vmatprep.subr.bf16.mxu0 %v1506
    %1797 = vmatpush1.bf16.msra.mxu0 %v1505
    %1798 = vmatprep.subr.bf16.mxu0 %v1504
    %1799 = vmatpush1.bf16.msra.mxu0 %v1503
    %1800 = vmatprep.subr.bf16.mxu0 %v1502
    %1801 = vmatpush1.bf16.msra.mxu0 %v1501
    %1802 = vmatprep.subr.bf16.mxu0 %v1500
    %1803 = vmatpush1.bf16.msra.mxu0 %v1499
    %1804 = vmatprep.subr.bf16.mxu0 %v1530
    %1805 = vmatpush2.bf16.msra.mxu0 %v1529
    %1806 = vmatprep.subr.bf16.mxu0 %v1528
    %1807 = vmatpush2.bf16.msra.mxu0 %v1527
    %1808 = vmatprep.subr.bf16.mxu0 %v1526
    %1809 = vmatpush2.bf16.msra.mxu0 %v1525
    %1810 = vmatprep.subr.bf16.mxu0 %v1524
    %1811 = vmatpush2.bf16.msra.mxu0 %v1523
    %1812 = vmatprep.subr.bf16.mxu0 %v1522
    %1813 = vmatpush2.bf16.msra.mxu0 %v1521
    %1814 = vmatprep.subr.bf16.mxu0 %v1520
    %1815 = vmatpush2.bf16.msra.mxu0 %v1519
    %1816 = vmatprep.subr.bf16.mxu0 %v1518
    %1817 = vmatpush2.bf16.msra.mxu0 %v1517
    %1818 = vmatprep.subr.bf16.mxu0 %v1516
    %1819 = vmatpush2.bf16.msra.mxu0 %v1515
    %1820 = vmatprep.mubr.bf16.mxu0 %v878
    %1821 = vmatmul.mubr.bf16.gmra.mxu0 %v877
    %v1822 = vpop.f32.mrf.mxu0
    %v1823 = vadd.f32 %v1780, %v1822
    %v1824 = vpop.f32.mrf.mxu0
    %v1825 = vadd.f32 %v1782, %v1824
    %v1826 = vpop.f32.mrf.mxu0
    %v1827 = vadd.f32 %v1784, %v1826
    %v1828 = vpop.f32.mrf.mxu0
    %v1829 = vadd.f32 %v1786, %v1828
    %1830 = vdwg.mxu0
    %v1831 = vmax.f32 %v1823, 0.0
    %v1832 = vmax.f32 %v1825, 0.0
    %v1833 = vmax.f32 %v1827, 0.0
    %v1834 = vmax.f32 %v1829, 0.0
    %v1835 = vpack.c.bf16 %v1833, %v1831
    %v1836 = vpack.c.bf16 %v1834, %v1832
    %v1837 = vld [vmem:[%s5] sm:$0xf]
    %v1838 = vld [vmem:[%s5 + $0x4] sm:$0xf]
    %v1839 = vld [vmem:[%s5 + $0x8] sm:$0xf]
    %v1840 = vld [vmem:[%s5 + $0xc] sm:$0xf]
    %v1841 = vld [vmem:[%s5 + $0x10] sm:$0xf]
    %v1842 = vld [vmem:[%s5 + $0x14] sm:$0xf]
    %v1843 = vld [vmem:[%s5 + $0x18] sm:$0xf]
    %v1844 = vld [vmem:[%s5 + $0x1c] sm:$0xf]
    %v1845 = vld [vmem:[%s5 + $0x20] sm:$0xf]
    %v1846 = vld [vmem:[%s5 + $0x24] sm:$0xf]
    %v1847 = vld [vmem:[%s5 + $0x28] sm:$0xf]
    %v1848 = vld [vmem:[%s5 + $0x2c] sm:$0xf]
    %v1849 = vld [vmem:[%s5 + $0x30] sm:$0xf]
    %v1850 = vld [vmem:[%s5 + $0x34] sm:$0xf]
    %v1851 = vld [vmem:[%s5 + $0x38] sm:$0xf]
    %v1852 = vld [vmem:[%s5 + $0x3c] sm:$0xf]
    %v1853 = vld [vmem:[%s5 + $0x40] sm:$0xf]
    %v1854 = vld [vmem:[%s5 + $0x44] sm:$0xf]
    %v1855 = vld [vmem:[%s5 + $0x48] sm:$0xf]
    %v1856 = vld [vmem:[%s5 + $0x4c] sm:$0xf]
    %v1857 = vld [vmem:[%s5 + $0x50] sm:$0xf]
    %v1858 = vld [vmem:[%s5 + $0x54] sm:$0xf]
    %v1859 = vld [vmem:[%s5 + $0x58] sm:$0xf]
    %v1860 = vld [vmem:[%s5 + $0x5c] sm:$0xf]
    %v1861 = vld [vmem:[%s5 + $0x60] sm:$0xf]
    %v1862 = vld [vmem:[%s5 + $0x64] sm:$0xf]
    %v1863 = vld [vmem:[%s5 + $0x68] sm:$0xf]
    %v1864 = vld [vmem:[%s5 + $0x6c] sm:$0xf]
    %v1865 = vld [vmem:[%s5 + $0x70] sm:$0xf]
    %v1866 = vld [vmem:[%s5 + $0x74] sm:$0xf]
    %v1867 = vld [vmem:[%s5 + $0x78] sm:$0xf]
    %v1868 = vld [vmem:[%s5 + $0x7c] sm:$0xf]
    %v1869 = vld [vmem:[#allocation12] sm:$0x1]
    %v1871 = vlaneseq
    %v1872 = vshrl.u32 %v1871, 7
    %v1873 = vsub.s32 0, %v1872
    %v1874 = vrot.slane %v1869, %v1873
    %v1908 = vunpack.c.l.b16 %v1837
    %v1909 = vunpack.c.l.b16 %v1838
    %v1910 = vunpack.c.l.b16 %v1839
    %v1911 = vunpack.c.l.b16 %v1840
    %v1912 = vunpack.c.l.b16 %v1841
    %v1913 = vunpack.c.l.b16 %v1842
    %v1914 = vunpack.c.l.b16 %v1843
    %v1915 = vunpack.c.l.b16 %v1844
    %v1916 = vunpack.c.l.b16 %v1845
    %v1917 = vunpack.c.l.b16 %v1846
    %v1918 = vunpack.c.l.b16 %v1847
    %v1919 = vunpack.c.l.b16 %v1848
    %v1920 = vunpack.c.l.b16 %v1849
    %v1921 = vunpack.c.l.b16 %v1850
    %v1922 = vunpack.c.l.b16 %v1851
    %v1923 = vunpack.c.l.b16 %v1852
    %v1924 = vunpack.c.l.b16 %v1853
    %v1925 = vunpack.c.l.b16 %v1854
    %v1926 = vunpack.c.l.b16 %v1855
    %v1927 = vunpack.c.l.b16 %v1856
    %v1928 = vunpack.c.l.b16 %v1857
    %v1929 = vunpack.c.l.b16 %v1858
    %v1930 = vunpack.c.l.b16 %v1859
    %v1931 = vunpack.c.l.b16 %v1860
    %v1932 = vunpack.c.l.b16 %v1861
    %v1933 = vunpack.c.l.b16 %v1862
    %v1934 = vunpack.c.l.b16 %v1863
    %v1935 = vunpack.c.l.b16 %v1864
    %v1936 = vunpack.c.l.b16 %v1865
    %v1937 = vunpack.c.l.b16 %v1866
    %v1938 = vunpack.c.l.b16 %v1867
    %v1939 = vunpack.c.l.b16 %v1868
    %v1940 = vpack.c.b16 %v1909, %v1908
    %v1941 = vpack.c.b16 %v1911, %v1910
    %v1942 = vpack.c.b16 %v1913, %v1912
    %v1943 = vpack.c.b16 %v1915, %v1914
    %v1944 = vpack.c.b16 %v1917, %v1916
    %v1945 = vpack.c.b16 %v1919, %v1918
    %v1946 = vpack.c.b16 %v1921, %v1920
    %v1947 = vpack.c.b16 %v1923, %v1922
    %v1948 = vpack.c.b16 %v1925, %v1924
    %v1949 = vpack.c.b16 %v1927, %v1926
    %v1950 = vpack.c.b16 %v1929, %v1928
    %v1951 = vpack.c.b16 %v1931, %v1930
    %v1952 = vpack.c.b16 %v1933, %v1932
    %v1953 = vpack.c.b16 %v1935, %v1934
    %v1954 = vpack.c.b16 %v1937, %v1936
    %v1955 = vpack.c.b16 %v1939, %v1938
    %1972 = vmatprep.subr.bf16.mxu0 0
    %1973 = vmatpush1.bf16.msra.mxu0 %v1947
    %1974 = vmatprep.subr.bf16.mxu0 0
    %1975 = vmatpush1.bf16.msra.mxu0 %v1946
    %1976 = vmatprep.subr.bf16.mxu0 0
    %1977 = vmatpush1.bf16.msra.mxu0 %v1945
    %1978 = vmatprep.subr.bf16.mxu0 0
    %1979 = vmatpush1.bf16.msra.mxu0 %v1944
    %1980 = vmatprep.subr.bf16.mxu0 0
    %1981 = vmatpush1.bf16.msra.mxu0 %v1943
    %1982 = vmatprep.subr.bf16.mxu0 0
    %1983 = vmatpush1.bf16.msra.mxu0 %v1942
    %1984 = vmatprep.subr.bf16.mxu0 0
    %1985 = vmatpush1.bf16.msra.mxu0 %v1941
    %1986 = vmatprep.subr.bf16.mxu0 0
    %1987 = vmatpush1.bf16.msra.mxu0 %v1940
    %1988 = vmatprep.subr.bf16.mxu0 0
    %1989 = vmatpush2.bf16.msra.mxu0 %v1955
    %1990 = vmatprep.subr.bf16.mxu0 0
    %1991 = vmatpush2.bf16.msra.mxu0 %v1954
    %1992 = vmatprep.subr.bf16.mxu0 0
    %1993 = vmatpush2.bf16.msra.mxu0 %v1953
    %1994 = vmatprep.subr.bf16.mxu0 0
    %1995 = vmatpush2.bf16.msra.mxu0 %v1952
    %1996 = vmatprep.subr.bf16.mxu0 0
    %1997 = vmatpush2.bf16.msra.mxu0 %v1951
    %1998 = vmatprep.subr.bf16.mxu0 0
    %1999 = vmatpush2.bf16.msra.mxu0 %v1950
    %2000 = vmatprep.subr.bf16.mxu0 0
    %2001 = vmatpush2.bf16.msra.mxu0 %v1949
    %2002 = vmatprep.subr.bf16.mxu0 0
    %2003 = vmatpush2.bf16.msra.mxu0 %v1948
    %2004 = vmatprep.mubr.bf16.mxu0 %v1836
    %2005 = vmatmul.mubr.bf16.gmra.mxu0 %v1835
    %v2006 = vpop.f32.mrf.mxu0
    %v2007 = vadd.f32 %v1874, %v2006
    %v2008 = vpop.f32.mrf.mxu0
    %v2009 = vpop.f32.mrf.mxu0
    %v2010 = vadd.f32 %v1874, %v2009
    %v2011 = vpop.f32.mrf.mxu0
    %2012 = vdwg.mxu0
    %v2013 = vmax.f32 %v2007, 0.0
    %v2014 = vmax.f32 %v2010, 0.0
    %v2015 = vpack.c.bf16 %v2014, %v2013
    %v2016 = vld [vmem:[%s7] sm:$0xf]
    %v2017 = vld [vmem:[%s7 + $0x4] sm:$0xf]
    %v2018 = vld [vmem:[%s7 + $0x8] sm:$0xf]
    %v2019 = vld [vmem:[%s7 + $0xc] sm:$0xf]
    %v2020 = vld [vmem:[%s7 + $0x10] sm:$0xf]
    %v2021 = vld [vmem:[%s7 + $0x14] sm:$0xf]
    %v2022 = vld [vmem:[%s7 + $0x18] sm:$0xf]
    %v2023 = vld [vmem:[%s7 + $0x1c] sm:$0xf]
    %v2024 = vld [vmem:[%s7 + $0x20] sm:$0xf]
    %v2025 = vld [vmem:[%s7 + $0x24] sm:$0xf]
    %v2026 = vld [vmem:[%s7 + $0x28] sm:$0xf]
    %v2027 = vld [vmem:[%s7 + $0x2c] sm:$0xf]
    %v2028 = vld [vmem:[%s7 + $0x30] sm:$0xf]
    %v2029 = vld [vmem:[%s7 + $0x34] sm:$0xf]
    %v2030 = vld [vmem:[%s7 + $0x38] sm:$0xf]
    %v2031 = vld [vmem:[%s7 + $0x3c] sm:$0xf]
    %v2032 = vld [vmem:[#allocation14] sm:$0x1]
    %v2034 = vlaneseq
    %v2035 = vshrl.u32 %v2034, 7
    %v2036 = vsub.s32 0, %v2035
    %v2037 = vrot.slane %v2032, %v2036
    %v2055 = vunpack.c.l.b16 %v2016
    %v2056 = vunpack.c.l.b16 %v2017
    %v2057 = vunpack.c.l.b16 %v2018
    %v2058 = vunpack.c.l.b16 %v2019
    %v2059 = vunpack.c.l.b16 %v2020
    %v2060 = vunpack.c.l.b16 %v2021
    %v2061 = vunpack.c.l.b16 %v2022
    %v2062 = vunpack.c.l.b16 %v2023
    %v2063 = vunpack.c.l.b16 %v2024
    %v2064 = vunpack.c.l.b16 %v2025
    %v2065 = vunpack.c.l.b16 %v2026
    %v2066 = vunpack.c.l.b16 %v2027
    %v2067 = vunpack.c.l.b16 %v2028
    %v2068 = vunpack.c.l.b16 %v2029
    %v2069 = vunpack.c.l.b16 %v2030
    %v2070 = vunpack.c.l.b16 %v2031
    %v2071 = vpack.c.b16 %v2056, %v2055
    %v2072 = vpack.c.b16 %v2058, %v2057
    %v2073 = vpack.c.b16 %v2060, %v2059
    %v2074 = vpack.c.b16 %v2062, %v2061
    %v2075 = vpack.c.b16 %v2064, %v2063
    %v2076 = vpack.c.b16 %v2066, %v2065
    %v2077 = vpack.c.b16 %v2068, %v2067
    %v2078 = vpack.c.b16 %v2070, %v2069
    %2087 = vmatprep.subr.bf16.mxu0 0
    %2088 = vmatpush1.bf16.msra.mxu0 %v2078
    %2089 = vmatprep.subr.bf16.mxu0 0
    %2090 = vmatpush1.bf16.msra.mxu0 %v2077
    %2091 = vmatprep.subr.bf16.mxu0 0
    %2092 = vmatpush1.bf16.msra.mxu0 %v2076
    %2093 = vmatprep.subr.bf16.mxu0 0
    %2094 = vmatpush1.bf16.msra.mxu0 %v2075
    %2095 = vmatprep.subr.bf16.mxu0 0
    %2096 = vmatpush1.bf16.msra.mxu0 %v2074
    %2097 = vmatprep.subr.bf16.mxu0 0
    %2098 = vmatpush1.bf16.msra.mxu0 %v2073
    %2099 = vmatprep.subr.bf16.mxu0 0
    %2100 = vmatpush1.bf16.msra.mxu0 %v2072
    %2101 = vmatprep.subr.bf16.mxu0 0
    %2102 = vmatpush1.bf16.msra.mxu0 %v2071
    %2103 = vmatprep.subr.bf16.mxu0 0
    %2104 = vmatpush2.bf16.msra.mxu0 0
    %2105 = vmatprep.subr.bf16.mxu0 0
    %2106 = vmatpush2.bf16.msra.mxu0 0
    %2107 = vmatprep.subr.bf16.mxu0 0
    %2108 = vmatpush2.bf16.msra.mxu0 0
    %2109 = vmatprep.subr.bf16.mxu0 0
    %2110 = vmatpush2.bf16.msra.mxu0 0
    %2111 = vmatprep.subr.bf16.mxu0 0
    %2112 = vmatpush2.bf16.msra.mxu0 0
    %2113 = vmatprep.subr.bf16.mxu0 0
    %2114 = vmatpush2.bf16.msra.mxu0 0
    %2115 = vmatprep.subr.bf16.mxu0 0
    %2116 = vmatpush2.bf16.msra.mxu0 0
    %2117 = vmatprep.subr.bf16.mxu0 0
    %2118 = vmatpush2.bf16.msra.mxu0 0
    %2119 = vmatprep.mubr.bf16.mxu0 0
    %2120 = vmatmul.mubr.bf16.gmra.mxu0 %v2015
    %v2121 = vpop.f32.mrf.mxu0
    %v2122 = vadd.f32 %v2037, %v2121
    %v2123 = vpop.f32.mrf.mxu0
    %v2124 = vpop.f32.mrf.mxu0
    %v2125 = vadd.f32 %v2037, %v2124
    %v2126 = vpop.f32.mrf.mxu0
    %2127 = vdwg.mxu0
    %v2128 = vmax.f32 %v2122, 0.0
    %v2129 = vmax.f32 %v2125, 0.0
    %v2130 = vpack.c.bf16 %v2129, %v2128
    %v2131 = vld [vmem:[%s9] sm:$0xf]
    %v2132 = vld [vmem:[%s9 + $0x4] sm:$0xf]
    %v2133 = vld [vmem:[%s9 + $0x8] sm:$0xf]
    %v2134 = vld [vmem:[%s9 + $0xc] sm:$0xf]
    %v2135 = vld [vmem:[%s9 + $0x10] sm:$0xf]
    %v2136 = vld [vmem:[%s9 + $0x14] sm:$0xf]
    %v2137 = vld [vmem:[%s9 + $0x18] sm:$0xf]
    %v2138 = vld [vmem:[%s9 + $0x1c] sm:$0xf]
    %v2139 = vld [vmem:[%s10] sm:$0x1]
    %v2141 = vlaneseq
    %v2142 = vshrl.u32 %v2141, 7
    %v2143 = vsub.s32 0, %v2142
    %v2144 = vrot.slane %v2139, %v2143
    %v2154 = vunpack.c.l.b16 %v2131
    %v2155 = vunpack.c.l.b16 %v2132
    %v2156 = vunpack.c.l.b16 %v2133
    %v2157 = vunpack.c.l.b16 %v2134
    %v2158 = vunpack.c.l.b16 %v2135
    %v2159 = vunpack.c.l.b16 %v2136
    %v2160 = vunpack.c.l.b16 %v2137
    %v2161 = vunpack.c.l.b16 %v2138
    %v2162 = vpack.c.b16 %v2155, %v2154
    %v2163 = vpack.c.b16 %v2157, %v2156
    %v2164 = vpack.c.b16 %v2159, %v2158
    %v2165 = vpack.c.b16 %v2161, %v2160
    %vm2170 = vcmask 523264
    %v2172 = vsel %vm2170, %v2130, 0
    %2174 = vmatprep.subr.bf16.mxu0 0
    %2175 = vmatpush1.bf16.msra.mxu0 0
    %2176 = vmatprep.subr.bf16.mxu0 0
    %2177 = vmatpush1.bf16.msra.mxu0 0
    %2178 = vmatprep.subr.bf16.mxu0 0
    %2179 = vmatpush1.bf16.msra.mxu0 0
    %2180 = vmatprep.subr.bf16.mxu0 0
    %2181 = vmatpush1.bf16.msra.mxu0 0
    %2182 = vmatprep.subr.bf16.mxu0 0
    %2183 = vmatpush1.bf16.msra.mxu0 %v2165
    %2184 = vmatprep.subr.bf16.mxu0 0
    %2185 = vmatpush1.bf16.msra.mxu0 %v2164
    %2186 = vmatprep.subr.bf16.mxu0 0
    %2187 = vmatpush1.bf16.msra.mxu0 %v2163
    %2188 = vmatprep.subr.bf16.mxu0 0
    %2189 = vmatpush1.bf16.msra.mxu0 %v2162
    %2190 = vmatprep.subr.bf16.mxu0 0
    %2191 = vmatpush2.bf16.msra.mxu0 0
    %2192 = vmatprep.subr.bf16.mxu0 0
    %2193 = vmatpush2.bf16.msra.mxu0 0
    %2194 = vmatprep.subr.bf16.mxu0 0
    %2195 = vmatpush2.bf16.msra.mxu0 0
    %2196 = vmatprep.subr.bf16.mxu0 0
    %2197 = vmatpush2.bf16.msra.mxu0 0
    %2198 = vmatprep.subr.bf16.mxu0 0
    %2199 = vmatpush2.bf16.msra.mxu0 0
    %2200 = vmatprep.subr.bf16.mxu0 0
    %2201 = vmatpush2.bf16.msra.mxu0 0
    %2202 = vmatprep.subr.bf16.mxu0 0
    %2203 = vmatpush2.bf16.msra.mxu0 0
    %2204 = vmatprep.subr.bf16.mxu0 0
    %2205 = vmatpush2.bf16.msra.mxu0 0
    %2206 = vmatprep.mubr.bf16.mxu0 0
    %2207 = vmatmul.mubr.bf16.gmra.mxu0 %v2172
    %v2208 = vpop.f32.mrf.mxu0
    %v2209 = vadd.f32 %v2144, %v2208
    %v2210 = vpop.f32.mrf.mxu0
    %v2211 = vpop.f32.mrf.mxu0
    %v2212 = vadd.f32 %v2144, %v2211
    %v2213 = vpop.f32.mrf.mxu0
    %2214 = vdwg.mxu0
    %v2215 = vmax.f32 %v2209, 0.0
    %v2216 = vmax.f32 %v2212, 0.0
    %v2217 = vpack.c.bf16 %v2216, %v2215
    %v2218 = vld [vmem:[%s11] sm:$0xf]
    %v2219 = vld [vmem:[%s11 + $0x4] sm:$0xf]
    %v2220 = vld [vmem:[%s11 + $0x8] sm:$0xf]
    %v2221 = vld [vmem:[%s11 + $0xc] sm:$0xf]
    %v2222 = vld [vmem:[%s12] sm:$0x1]
    %v2224 = vlaneseq
    %v2225 = vshrl.u32 %v2224, 7
    %v2226 = vsub.s32 0, %v2225
    %v2227 = vrot.slane %v2222, %v2226
    %v2233 = vunpack.c.l.b16 %v2218
    %v2234 = vunpack.c.l.b16 %v2219
    %v2235 = vunpack.c.l.b16 %v2220
    %v2236 = vunpack.c.l.b16 %v2221
    %v2237 = vpack.c.b16 %v2234, %v2233
    %v2238 = vpack.c.b16 %v2236, %v2235
    %vm2241 = vcmask 261120
    %v2243 = vsel %vm2241, %v2217, 0
    %2245 = vmatprep.subr.bf16.mxu0 0
    %2246 = vmatpush1.bf16.msra.mxu0 0
    %2247 = vmatprep.subr.bf16.mxu0 0
    %2248 = vmatpush1.bf16.msra.mxu0 0
    %2249 = vmatprep.subr.bf16.mxu0 0
    %2250 = vmatpush1.bf16.msra.mxu0 0
    %2251 = vmatprep.subr.bf16.mxu0 0
    %2252 = vmatpush1.bf16.msra.mxu0 0
    %2253 = vmatprep.subr.bf16.mxu0 0
    %2254 = vmatpush1.bf16.msra.mxu0 0
    %2255 = vmatprep.subr.bf16.mxu0 0
    %2256 = vmatpush1.bf16.msra.mxu0 0
    %2257 = vmatprep.subr.bf16.mxu0 0
    %2258 = vmatpush1.bf16.msra.mxu0 %v2238
    %2259 = vmatprep.subr.bf16.mxu0 0
    %2260 = vmatpush1.bf16.msra.mxu0 %v2237
    %2261 = vmatprep.subr.bf16.mxu0 0
    %2262 = vmatpush2.bf16.msra.mxu0 0
    %2263 = vmatprep.subr.bf16.mxu0 0
    %2264 = vmatpush2.bf16.msra.mxu0 0
    %2265 = vmatprep.subr.bf16.mxu0 0
    %2266 = vmatpush2.bf16.msra.mxu0 0
    %2267 = vmatprep.subr.bf16.mxu0 0
    %2268 = vmatpush2.bf16.msra.mxu0 0
    %2269 = vmatprep.subr.bf16.mxu0 0
    %2270 = vmatpush2.bf16.msra.mxu0 0
    %2271 = vmatprep.subr.bf16.mxu0 0
    %2272 = vmatpush2.bf16.msra.mxu0 0
    %2273 = vmatprep.subr.bf16.mxu0 0
    %2274 = vmatpush2.bf16.msra.mxu0 0
    %2275 = vmatprep.subr.bf16.mxu0 0
    %2276 = vmatpush2.bf16.msra.mxu0 0
    %2277 = vmatprep.mubr.bf16.mxu0 0
    %2278 = vmatmul.mubr.bf16.gmra.mxu0 %v2243
    %v2279 = vpop.f32.mrf.mxu0
    %v2280 = vadd.f32 %v2227, %v2279
    %v2281 = vpop.f32.mrf.mxu0
    %v2282 = vpop.f32.mrf.mxu0
    %v2283 = vadd.f32 %v2227, %v2282
    %v2284 = vpop.f32.mrf.mxu0
    %2285 = vdwg.mxu0
    %v2286 = vmax.f32 %v2280, 0.0
    %v2287 = vmax.f32 %v2283, 0.0
    %v2288 = vld [vmem:[%s13] sm:$0x1]
    %v2290 = vlaneseq
    %v2291 = vshrl.u32 %v2290, 7
    %v2292 = vsub.s32 0, %v2291
    %v2293 = vrot.slane %v2288, %v2292
    %v2295 = vmul.f32 %v2286, %v2293
    %v2296 = vmul.f32 %v2287, %v2293
    %vm2297 = vcmask 130048
    %v2298 = vsel %vm2297, %v2295, 0.0
    %2299 = vadd.xlane.f32.xlu0 %v2298
    %v2300 = vpop.xlane.xlu0 %2299
    %v2301 = vsel %vm2297, %v2296, 0.0
    %2302 = vadd.xlane.f32.xlu0 %v2301
    %v2303 = vpop.xlane.xlu0 %2302
    %v2304 = vld [vmem:[#allocation2] sm:$0x1]
    %v2306 = vlaneseq
    %v2307 = vshrl.u32 %v2306, 7
    %v2308 = vsub.s32 0, %v2307
    %v2309 = vrot.slane %v2304, %v2308
    %v2311 = vadd.f32 %v2300, %v2309
    %v2312 = vadd.f32 %v2303, %v2309
    %2315 = vset.pattern.permute.xlu0 0
    %2316 = vperm.xlu0 %2315, %v2311
    %v2317 = vpop.permute.xlu0 %2316
    %2318 = vset.pattern.permute.xlu0 0
    %2319 = vperm.xlu0 %2318, %v2312
    %v2320 = vpop.permute.xlu0 %2319
    %v2321 = vlaneseq
    %v2322 = vand.u32 %v2321, 127
    %v2323 = vlaneseq
    %v2324 = vshrl.u32 %v2323, 7
    %v2325 = vsub.s32 %v2322, %v2324
    %v2326 = vrot.slane %v2317, %v2325
    %v2327 = vadd.s32 %v2322, 4294967288
    %v2328 = vlaneseq
    %v2329 = vshrl.u32 %v2328, 7
    %v2330 = vsub.s32 %v2327, %v2329
    %v2331 = vrot.slane %v2320, %v2330
    %vm2332 = vcmask 130112
    %v2333 = vsel %vm2332, %v2331, %v2326
    %vm2335 = vcmask 122880
    %2336 = vst.msk [vmem:[#allocation15] sm:$0x1] %vm2335, %v2333
    // Predicated region
    $region90: #{tpu_custom_call.1} parent=1 // pred_check
      _
    $region91: #{tpu_custom_call.1} parent=1 // pred_check_branch
      %2338 = sbr.rel (0) target = $region93
    $region92: #{tpu_custom_call.1} parent=1 // pred_region
      %s2340 = ssub.s32 16, 16
      %2341 = vsyncadd [#allocation5], %s2340
      %s2343 = sshll.u32 [#allocation15], 4
      %s2344 = int_to_ptr.vmem [resolvable:$true] %s2343
      %2346 = dma.vmem_to_hbm [thread:$0]  %s2344, 16, %s15, [#allocation5]
    $region93: #{tpu_custom_call.1} parent=1 // pred_fallthru
      _
    // Predicated region
    $region94: #{tpu_custom_call.1} parent=1 // pred_check
      _
    $region95: #{tpu_custom_call.1} parent=1 // pred_check_branch
      %2348 = sbr.rel (0) target = $region97
    $region96: #{tpu_custom_call.1} parent=1 // pred_region
      %2349 = dma.done [#allocation5], 16
    $region97: #{tpu_custom_call.1} parent=1 // pred_fallthru
      _
    %2350 = vsyncpa [#allocation4], 1
    %2351 = vsyncpa [#allocation7], 1
    %2352 = vsyncpa [#allocation10], 1
    %2353 = vsyncpa [#allocation13], 1
    %2354 = vsyncpa [#allocation5], 1

</llo_original>
